<compile_context>
chip_gen: v7x
topology: tpu7x:2x2x1
jax: 0.10.0
libtpu: 0.0.40
codegen_flags: <defaults>
</compile_context>

<pallas_src>
import functools

import jax
import jax.numpy as jnp
from jax.experimental import pallas as pl
from jax.experimental.pallas import tpu as pltpu


# ----------------------------- tiling helpers ------------------------------

_TM, _TN, _TK = 512, 768, 1024    # matmul tile caps
_TROWS = 512                      # row-tile cap for fused row-wise kernels
_ICHUNK = 1024                    # FFN intermediate chunk cap
_TQ = 256                         # attention query-row tile cap


def _pick_tile(dim, cap, align):
    """Largest multiple of `align` <= cap that divides dim, else the full dim.

    Full-dim blocks are always legal; aligned divisors keep (8,128) tiling
    happy and avoid degenerate per-row grids / masked partial stores.
    """
    if dim <= cap:
        return dim
    t = (cap // align) * align
    while t >= align:
        if dim % t == 0:
            return t
        t -= align
    return dim


def _default_vmem_limit():
    # ~80% of physical VMEM: ~51 MiB on v7x (64 MiB/TC), ~102 MiB on v5e/v6e.
    try:
        cap = pltpu.get_tpu_info().vmem_capacity_bytes
        return max(48 << 20, min(int(cap * 0.8), 110 << 20))
    except Exception:
        return 48 << 20      # conservative fallback, safe on every generation


_VMEM_LIMIT = _default_vmem_limit()


def _cparams(sem):
    return pltpu.CompilerParams(dimension_semantics=sem,
                                vmem_limit_bytes=_VMEM_LIMIT)


# ----------------------------- tiled linear --------------------------------

def _linear_kernel(x_ref, w_ref, b_ref, o_ref, acc_ref, *, activation):
    @pl.when(pl.program_id(2) == 0)
    def _init():
        acc_ref[...] = jnp.zeros_like(acc_ref)

    acc_ref[...] += jnp.dot(x_ref[...], w_ref[...],
                            preferred_element_type=jnp.float32)

    @pl.when(pl.program_id(2) == pl.num_programs(2) - 1)
    def _finalize():
        y = acc_ref[...] + b_ref[...].astype(jnp.float32)
        if activation == "tanh":
            y = jnp.tanh(y)
        o_ref[...] = y.astype(o_ref.dtype)


def linear(x, w, b, activation="none", out_dtype=jnp.bfloat16):
    """y = act(x @ w + b).  x:[M,K], w:[K,N] (bf16), b:[N] f32."""
    M, K = x.shape
    N = w.shape[1]
    x = x.astype(w.dtype)                       # bf16 MXU inputs
    tm = _pick_tile(M, _TM, 8)
    tn = _pick_tile(N, _TN, 128)
    tk = _pick_tile(K, _TK, 128)                # full K for K <= 1024
    return pl.pallas_call(
        functools.partial(_linear_kernel, activation=activation),
        grid=(M // tm, N // tn, K // tk),
        in_specs=[
            pl.BlockSpec((tm, tk), lambda i, j, k: (i, k)),
            pl.BlockSpec((tk, tn), lambda i, j, k: (k, j)),
            pl.BlockSpec((1, tn), lambda i, j, k: (0, j)),
        ],
        out_specs=pl.BlockSpec((tm, tn), lambda i, j, k: (i, j)),
        out_shape=jax.ShapeDtypeStruct((M, N), out_dtype),
        scratch_shapes=[pltpu.VMEM((tm, tn), jnp.float32)],
        compiler_params=_cparams(("parallel", "parallel", "arbitrary")),
    )(x, w, b.reshape(1, N))


# ----------------------------- layernorm (no residual) ---------------------

def _ln_kernel(x_ref, g_ref, b_ref, o_ref):
    x = x_ref[...].astype(jnp.float32)
    mu = jnp.mean(x, axis=-1, keepdims=True)
    xc = x - mu
    var = jnp.mean(xc * xc, axis=-1, keepdims=True)
    y = xc * jax.lax.rsqrt(var + 1e-12) * g_ref[...] + b_ref[...]
    o_ref[...] = y.astype(o_ref.dtype)


def layernorm(x, gamma, beta, out_dtype=jnp.bfloat16):
    M, H = x.shape
    tm = _pick_tile(M, _TROWS, 8)
    row = lambda i: (i, 0)
    const = lambda i: (0, 0)
    return pl.pallas_call(
        _ln_kernel,
        grid=(M // tm,),
        in_specs=[pl.BlockSpec((tm, H), row),
                  pl.BlockSpec((1, H), const),
                  pl.BlockSpec((1, H), const)],
        out_specs=pl.BlockSpec((tm, H), row),
        out_shape=jax.ShapeDtypeStruct((M, H), out_dtype),
        compiler_params=_cparams(("parallel",)),
    )(x, gamma.reshape(1, H), beta.reshape(1, H))


# ----------------------------- attention ------------------------------------

def _head_group(nh, hd):
    """Heads per group: group*hd ~ 128 lanes (lane-dense loads/stores)."""
    if hd > 128:
        return 1
    g = max(1, min(nh, 128 // hd))
    while g > 1 and nh % g != 0:
        g -= 1
    return g


def _attn_kernel(qkv_ref, bias_ref, o_ref, *, nh, hd, scale, tq, group):
    # qkv_ref: [S, 3H] bf16 (resident across the q-tile axis)
    # bias_ref: [1, S] f32 additive mask
    # o_ref:   [tq, H]
    H = nh * hd
    qs = pl.multiple_of(pl.program_id(1) * tq, tq)
    bias = bias_ref[...]                                   # [1, S] f32
    gw = group * hd
    # TODO(synk): for S >= 1024 switch to flash-style online softmax with KV
    # tiling instead of materializing [tq, S] scores per head (v7x VMEM).
    for g0 in range(0, nh, group):                         # static unroll
        c0 = g0 * hd
        # lane-dense group-wide loads; 1/sqrt(hd) folded into q (tq*gw muls).
        q_g = qkv_ref[pl.ds(qs, tq), c0:c0 + gw] * scale   # [tq, gw] bf16
        k_g = qkv_ref[:, H + c0:H + c0 + gw]               # [S,  gw] bf16
        v_g = qkv_ref[:, 2 * H + c0:2 * H + c0 + gw]       # [S,  gw] bf16
        parts = []
        for j in range(group):
            q = q_g[:, j * hd:(j + 1) * hd]
            k = k_g[:, j * hd:(j + 1) * hd]
            v = v_g[:, j * hd:(j + 1) * hd]
            # Contract on last dims -> no in-kernel transpose of K.
            s = jax.lax.dot_general(q, k, (((1,), (1,)), ((), ())),
                                    preferred_element_type=jnp.float32)
            s = s + bias                                   # broadcast [1,S]
            s = s - jnp.max(s, axis=-1, keepdims=True)
            p = jnp.exp(s)
            p = p * pl.reciprocal(jnp.sum(p, axis=-1, keepdims=True),
                                  approx=True)
            parts.append(jnp.dot(p.astype(v.dtype), v,
                                 preferred_element_type=jnp.float32))
        grp = parts[0] if group == 1 else jnp.concatenate(parts, axis=-1)
        # immediate bf16 store of the (lane-dense) group: bounds live ranges.
        o_ref[:, c0:c0 + gw] = grp.astype(o_ref.dtype)


def attention(qkv, bias, nh, hd):
    """qkv: [B, S, 3H] bf16 (fused QKV); bias: [B, 1, S] additive mask (f32)."""
    B, S, threeH = qkv.shape
    H = nh * hd
    tq = _pick_tile(S, _TQ, 8)
    nq = S // tq
    group = _head_group(nh, hd)
    scale = 1.0 / float(hd) ** 0.5
    return pl.pallas_call(
        functools.partial(_attn_kernel, nh=nh, hd=hd, scale=scale,
                          tq=tq, group=group),
        grid=(B, nq),
        in_specs=[pl.BlockSpec((None, S, threeH), lambda b, qi: (b, 0, 0)),
                  pl.BlockSpec((None, 1, S), lambda b, qi: (b, 0, 0))],
        out_specs=pl.BlockSpec((None, tq, H), lambda b, qi: (b, qi, 0)),
        out_shape=jax.ShapeDtypeStruct((B, S, H), jnp.bfloat16),
        compiler_params=_cparams(("parallel", "parallel")),
    )(qkv, bias)


# ---------------- fused: attn-out-proj + residual + LayerNorm ---------------

def _proj_res_ln_kernel(ctx_ref, res_ref, w_ref, b_ref, g_ref, bb_ref, o_ref):
    y = jnp.dot(ctx_ref[...], w_ref[...], preferred_element_type=jnp.float32)
    y = y + b_ref[...] + res_ref[...].astype(jnp.float32)
    mu = jnp.mean(y, axis=-1, keepdims=True)
    yc = y - mu
    var = jnp.mean(yc * yc, axis=-1, keepdims=True)
    o_ref[...] = (yc * jax.lax.rsqrt(var + 1e-12) * g_ref[...]
                  + bb_ref[...]).astype(o_ref.dtype)


def proj_residual_layernorm(ctx, resid, w, b, gamma, beta):
    M, H = ctx.shape
    tm = _pick_tile(M, _TROWS, 8)
    row = lambda i: (i, 0)
    const = lambda i: (0, 0)
    # TODO(synk): on v7x, single-buffer the constant-index weight block
    # (pipeline_mode=pl.Buffered(1)) to halve its VMEM footprint.
    return pl.pallas_call(
        _proj_res_ln_kernel,
        grid=(M // tm,),
        in_specs=[pl.BlockSpec((tm, H), row),
                  pl.BlockSpec((tm, H), row),
                  pl.BlockSpec((H, H), const),
                  pl.BlockSpec((1, H), const),
                  pl.BlockSpec((1, H), const),
                  pl.BlockSpec((1, H), const)],
        out_specs=pl.BlockSpec((tm, H), row),
        out_shape=jax.ShapeDtypeStruct((M, H), jnp.bfloat16),
        compiler_params=_cparams(("parallel",)),
    )(ctx, resid, w, b.reshape(1, H), gamma.reshape(1, H), beta.reshape(1, H))


# ---------------- fused: FFN (wi+GELU+wo2) + residual + LayerNorm -----------

def _ffn_res_ln_kernel(x_ref, wi_ref, bi_ref, wo_ref, bo_ref, g_ref, bb_ref,
                       o_ref, *, i_chunk):
    x = x_ref[...]                                          # bf16 [tm, H]
    I = wi_ref.shape[1]
    # residual + output bias, f32 accumulator of shape [tm, H]
    y = x.astype(jnp.float32) + bo_ref[...]
    c = 0.7978845608028654
    for ci in range(I // i_chunk):                          # chunk the I dim
        c0 = ci * i_chunk
        wi_c = wi_ref[:, c0:c0 + i_chunk]                   # [H, csz] bf16
        bi_c = bi_ref[:, c0:c0 + i_chunk]                   # [1, csz] f32
        h = jnp.dot(x, wi_c, preferred_element_type=jnp.float32) + bi_c
        # tanh-approx GELU.
        # TODO(synk): HuggingFace BERT default is erf-gelu; swap if bitwise
        # parity is needed.
        h = 0.5 * h * (1.0 + jnp.tanh(c * (h + 0.044715 * h * h * h)))
        y += jnp.dot(h.astype(x.dtype), wo_ref[c0:c0 + i_chunk, :],
                     preferred_element_type=jnp.float32)
    mu = jnp.mean(y, axis=-1, keepdims=True)
    yc = y - mu
    var = jnp.mean(yc * yc, axis=-1, keepdims=True)
    o_ref[...] = (yc * jax.lax.rsqrt(var + 1e-12) * g_ref[...]
                  + bb_ref[...]).astype(o_ref.dtype)


def ffn_residual_layernorm(x, wi, bi, wo2, bo2, gamma, beta):
    M, H = x.shape
    I = wi.shape[1]
    tm = _pick_tile(M, _TROWS, 8)
    i_chunk = _pick_tile(I, _ICHUNK, 128)
    row = lambda i: (i, 0)
    const = lambda i: (0, 0)
    # TODO(synk): on v7x, single-buffer the constant-index wi/wo2 blocks
    # (pipeline_mode=pl.Buffered(1)) to halve their VMEM footprint.
    return pl.pallas_call(
        functools.partial(_ffn_res_ln_kernel, i_chunk=i_chunk),
        grid=(M // tm,),
        in_specs=[pl.BlockSpec((tm, H), row),
                  pl.BlockSpec((H, I), const),
                  pl.BlockSpec((1, I), const),
                  pl.BlockSpec((I, H), const),
                  pl.BlockSpec((1, H), const),
                  pl.BlockSpec((1, H), const),
                  pl.BlockSpec((1, H), const)],
        out_specs=pl.BlockSpec((tm, H), row),
        out_shape=jax.ShapeDtypeStruct((M, H), jnp.bfloat16),
        compiler_params=_cparams(("parallel",)),
    )(x, wi, bi.reshape(1, I), wo2, bo2.reshape(1, H),
      gamma.reshape(1, H), beta.reshape(1, H))


# ---------------- topic head: mean + concat + FC + tanh + classifier --------

def _head_kernel(pooled_ref, topics_ref, wfc_ref, bfc_ref, wcls_ref, bcls_ref,
                 o_ref, *, hidden):
    topics = topics_ref[...]                               # [B, L, T] f32
    tv = jnp.mean(topics, axis=1)                          # [B, T]
    pooled = pooled_ref[...].astype(jnp.float32)           # [B, H]
    # cat([pooled, tv], 1) @ Wfc == pooled @ Wfc[:H] + tv @ Wfc[H:]
    w_h = wfc_ref[:hidden, :]
    w_t = wfc_ref[hidden:, :]
    h = (jnp.dot(pooled, w_h, preferred_element_type=jnp.float32)
         + jnp.dot(tv, w_t, preferred_element_type=jnp.float32)
         + bfc_ref[...])
    h = jnp.tanh(h)                                        # nn.Tanh()
    logits = (jnp.dot(h, wcls_ref[...], preferred_element_type=jnp.float32)
              + bcls_ref[...])
    o_ref[...] = logits.astype(o_ref.dtype)


def topic_head(pooled, word_topics, w_fc, b_fc, w_cls, b_cls, hidden):
    B = pooled.shape[0]
    num_labels = w_cls.shape[1]
    return pl.pallas_call(
        functools.partial(_head_kernel, hidden=hidden),
        out_shape=jax.ShapeDtypeStruct((B, num_labels), jnp.float32),
    )(pooled, word_topics, w_fc, b_fc.reshape(1, -1), w_cls, b_cls.reshape(1, -1))


# ----------------------------- BERT forward (glue + kernels) ----------------

def bert_forward(params, input_ids, attention_mask, token_type_ids, cfg):
    B, S = input_ids.shape
    H = cfg["hidden_size"]
    nh = cfg["num_heads"]
    hd = H // nh
    M = B * S

    # Embedding gathers (data-dependent indexing) stay in glue JAX.
    we = params["word_emb"][input_ids]                           # [B, S, H]
    pe = params["pos_emb"][:S][None, :, :]                       # [1, S, H]
    te = params["type_emb"][token_type_ids]                      # [B, S, H]
    emb = (we + pe + te).reshape(M, H)
    x = layernorm(emb, params["emb_ln_g"], params["emb_ln_b"])   # [M, H] bf16

    # additive mask bias, kept at [B, 1, S] (no per-head broadcast in HBM)
    bias = ((1.0 - attention_mask.astype(jnp.float32)) * -10000.0)[:, None, :]

    for layer in params["layers"]:
        qkv = linear(x, layer["w_qkv"], layer["b_qkv"])          # [M, 3H] bf16
        ctx = attention(qkv.reshape(B, S, 3 * H), bias, nh, hd)  # [B, S, H] bf16
        x = proj_residual_layernorm(ctx.reshape(M, H), x,
                                    layer["wo"], layer["bo"],
                                    layer["ln1_g"], layer["ln1_b"])
        x = ffn_residual_layernorm(x, layer["wi"], layer["bi"],
                                   layer["wo2"], layer["bo2"],
                                   layer["ln2_g"], layer["ln2_b"])

    cls = x.reshape(B, S, H)[:, 0, :]                            # [B, H] bf16
    pooled = linear(cls, params["pool_w"], params["pool_b"],
                    activation="tanh", out_dtype=jnp.float32)    # [B, H] f32
    return pooled


def bert_with_word_topics_forward(params, input_ids, attention_mask,
                                  token_type_ids, word_topic_ids,
                                  topic_matrix, cfg):
    pooled = bert_forward(params, input_ids, attention_mask, token_type_ids, cfg)
    # self.dropout(bert_output): identity in eval mode.
    # torch.index_select per row + stack == fancy-index gather (glue).
    word_topics = topic_matrix[word_topic_ids]                   # [B, L, T]
    logits = topic_head(pooled, word_topics,
                        params["fc_w"], params["fc_b"],
                        params["cls_w"], params["cls_b"],
                        cfg["hidden_size"])
    return logits
    # TODO(synk): labels path (CrossEntropyLoss) not implemented; returns logits only.


# ----------------------------- parameter init -------------------------------

def init_params(key, cfg):
    H = cfg["hidden_size"]
    I = cfg["intermediate_size"]
    T = cfg["num_topics"]
    HT = H + T
    NL = cfg["num_labels"]
    bf = jnp.bfloat16

    keys = iter(jax.random.split(key, 128))

    def norm(shape, dtype=jnp.float32):
        return (jax.random.normal(next(keys), shape, jnp.float32) * 0.02).astype(dtype)

    params = {
        "word_emb": norm((cfg["vocab_size"], H)),
        "pos_emb": norm((cfg["max_position"], H)),
        "type_emb": norm((cfg["type_vocab_size"], H)),
        "emb_ln_g": jnp.ones((H,), jnp.float32),
        "emb_ln_b": jnp.zeros((H,), jnp.float32),
        "layers": [],
        "pool_w": norm((H, H), bf),
        "pool_b": jnp.zeros((H,), jnp.float32),
        "fc_w": norm((HT, HT)),
        "fc_b": jnp.zeros((HT,), jnp.float32),
        "cls_w": norm((HT, NL)),
        "cls_b": jnp.zeros((NL,), jnp.float32),
    }
    for _ in range(cfg["num_layers"]):
        params["layers"].append({
            "w_qkv": norm((H, 3 * H), bf),
            "b_qkv": jnp.zeros((3 * H,), jnp.float32),
            "wo": norm((H, H), bf), "bo": jnp.zeros((H,), jnp.float32),
            "ln1_g": jnp.ones((H,), jnp.float32),
            "ln1_b": jnp.zeros((H,), jnp.float32),
            "wi": norm((H, I), bf), "bi": jnp.zeros((I,), jnp.float32),
            "wo2": norm((I, H), bf), "bo2": jnp.zeros((H,), jnp.float32),
            "ln2_g": jnp.ones((H,), jnp.float32),
            "ln2_b": jnp.zeros((H,), jnp.float32),
        })
    return params


# ----------------------------- main ------------------------------------------

if __name__ == "__main__":
    cfg = dict(
        vocab_size=50,
        hidden_size=32,
        num_heads=2,
        num_layers=2,
        intermediate_size=64,
        max_position=16,
        type_vocab_size=2,
        num_topics=16,
        num_labels=3,
        num_topic_rows=20,     # rows of topic_matrix
        topic_words=6,         # L: topic words per example
    )
    B, S = 2, 8

    root = jax.random.PRNGKey(0)
    k_par, k_ids, k_mask, k_wt, k_tm = jax.random.split(root, 5)

    params = init_params(k_par, cfg)

    input_ids = jax.random.randint(k_ids, (B, S), 1, cfg["vocab_size"], jnp.int32)
    attention_mask = jnp.ones((B, S), jnp.int32).at[1, -2:].set(0)   # pad tail of ex 1
    token_type_ids = jnp.zeros((B, S), jnp.int32)
    word_topic_ids = jax.random.randint(
        k_wt, (B, cfg["topic_words"]), 0, cfg["num_topic_rows"], jnp.int32)
    topic_matrix = jax.nn.softmax(
        jax.random.normal(k_tm, (cfg["num_topic_rows"], cfg["num_topics"]),
                          jnp.float32), axis=-1)

    fwd = jax.jit(functools.partial(bert_with_word_topics_forward, cfg=cfg))
    logits = fwd(params, input_ids, attention_mask, token_type_ids,
                 word_topic_ids, topic_matrix)
    logits = jax.block_until_ready(logits)

    assert logits.shape == (B, cfg["num_labels"]), logits.shape
    assert bool(jnp.all(jnp.isfinite(logits)))
    print("KERNEL_OK")
</pallas_src>

<mosaic_0001>
module attributes {stable_mosaic.version = 11 : i64} {
  func.func @_ln_kernel(%arg0: i32, %arg1: memref<16x32xf32, #tpu.memory_space<vmem>>, %arg2: memref<1x32xf32, #tpu.memory_space<vmem>>, %arg3: memref<1x32xf32, #tpu.memory_space<vmem>>, %arg4: memref<16x32xbf16, #tpu.memory_space<vmem>>) attributes {dimension_semantics = [#tpu.dimension_semantics<parallel>], iteration_bounds = array<i64: 1>, scalar_prefetch = 0 : i64, scratch_operands = 0 : i64, tpu.core_type = #tpu.core_type<tc>, window_params = [{transform_indices = @transform_0, window_bounds = array<i64: 16, 32>}, {pipeline_mode = #tpu.pipeline_mode<synchronous>, transform_indices = @transform_1, window_bounds = array<i64: 1, 32>}, {pipeline_mode = #tpu.pipeline_mode<synchronous>, transform_indices = @transform_2, window_bounds = array<i64: 1, 32>}, {transform_indices = @transform_3, window_bounds = array<i64: 16, 32>}]} {
    %c0 = arith.constant 0 : index
    %c0_0 = arith.constant 0 : index
    %0 = vector.load %arg1[%c0, %c0_0] : memref<16x32xf32, #tpu.memory_space<vmem>>, vector<16x32xf32>
    %cst = arith.constant dense<0.000000e+00> : vector<16xf32>
    %1 = vector.multi_reduction <add>, %0, %cst [1] : vector<16x32xf32> to vector<16xf32>
    %2 = vector.shape_cast %1 : vector<16xf32> to vector<16x1xf32>
    %cst_1 = arith.constant 3.200000e+01 : f32
    %3 = vector.broadcast %cst_1 : f32 to vector<16x1xf32>
    %4 = arith.divf %2, %3 : vector<16x1xf32>
    %5 = vector.broadcast %4 : vector<16x1xf32> to vector<16x32xf32>
    %6 = arith.subf %0, %5 : vector<16x32xf32>
    %7 = arith.mulf %6, %6 : vector<16x32xf32>
    %cst_2 = arith.constant dense<0.000000e+00> : vector<16xf32>
    %8 = vector.multi_reduction <add>, %7, %cst_2 [1] : vector<16x32xf32> to vector<16xf32>
    %9 = vector.shape_cast %8 : vector<16xf32> to vector<16x1xf32>
    %cst_3 = arith.constant 3.200000e+01 : f32
    %10 = vector.broadcast %cst_3 : f32 to vector<16x1xf32>
    %11 = arith.divf %9, %10 : vector<16x1xf32>
    %cst_4 = arith.constant 9.99999996E-13 : f32
    %12 = vector.broadcast %cst_4 : f32 to vector<16x1xf32>
    %13 = arith.addf %11, %12 : vector<16x1xf32>
    %14 = math.rsqrt %13 : vector<16x1xf32>
    %15 = vector.broadcast %14 : vector<16x1xf32> to vector<16x32xf32>
    %16 = arith.mulf %6, %15 : vector<16x32xf32>
    %c0_5 = arith.constant 0 : index
    %c0_6 = arith.constant 0 : index
    %17 = vector.load %arg2[%c0_5, %c0_6] : memref<1x32xf32, #tpu.memory_space<vmem>>, vector<1x32xf32>
    %18 = vector.broadcast %17 : vector<1x32xf32> to vector<16x32xf32>
    %19 = arith.mulf %16, %18 : vector<16x32xf32>
    %c0_7 = arith.constant 0 : index
    %c0_8 = arith.constant 0 : index
    %20 = vector.load %arg3[%c0_7, %c0_8] : memref<1x32xf32, #tpu.memory_space<vmem>>, vector<1x32xf32>
    %21 = vector.broadcast %20 : vector<1x32xf32> to vector<16x32xf32>
    %22 = arith.addf %19, %21 : vector<16x32xf32>
    %23 = arith.truncf %22 : vector<16x32xf32> to vector<16x32xbf16>
    %c0_9 = arith.constant 0 : index
    %c0_10 = arith.constant 0 : index
    %24 = vector.load %arg4[%c0_9, %c0_10] : memref<16x32xbf16, #tpu.memory_space<vmem>>, vector<16x32xbf16>
    tpu.vector_store %arg4[%c0_9, %c0_10], %23 {strides = array<i32>} : memref<16x32xbf16, #tpu.memory_space<vmem>>, vector<16x32xbf16>,
    return
  }
  func.func @transform_0(%arg0: i32) -> (i32, i32) {
    %c0_i32 = arith.constant 0 : i32
    %c0_i32_0 = arith.constant 0 : i32
    return %arg0, %c0_i32 : i32, i32
  }
  func.func @transform_1(%arg0: i32) -> (i32, i32) {
    %c0_i32 = arith.constant 0 : i32
    %c0_i32_0 = arith.constant 0 : i32
    %c0_i32_1 = arith.constant 0 : i32
    return %c0_i32, %c0_i32_0 : i32, i32
  }
  func.func @transform_2(%arg0: i32) -> (i32, i32) {
    %c0_i32 = arith.constant 0 : i32
    %c0_i32_0 = arith.constant 0 : i32
    %c0_i32_1 = arith.constant 0 : i32
    return %c0_i32, %c0_i32_0 : i32, i32
  }
  func.func @transform_3(%arg0: i32) -> (i32, i32) {
    %c0_i32 = arith.constant 0 : i32
    %c0_i32_0 = arith.constant 0 : i32
    return %arg0, %c0_i32 : i32, i32
  }
}

module attributes {stable_mosaic.version = 11 : i64} {
  func.func @_linear_kernel(%arg0: i32, %arg1: i32, %arg2: i32, %arg3: memref<16x32xbf16, #tpu.memory_space<vmem>>, %arg4: memref<32x96xbf16, #tpu.memory_space<vmem>>, %arg5: memref<1x96xf32, #tpu.memory_space<vmem>>, %arg6: memref<16x96xbf16, #tpu.memory_space<vmem>>, %arg7: memref<16x96xf32, #tpu.memory_space<vmem>>) attributes {dimension_semantics = [#tpu.dimension_semantics<parallel>, #tpu.dimension_semantics<parallel>, #tpu.dimension_semantics<arbitrary>], iteration_bounds = array<i64: 1, 1, 1>, scalar_prefetch = 0 : i64, scratch_operands = 1 : i64, tpu.core_type = #tpu.core_type<tc>, window_params = [{transform_indices = @transform_0, window_bounds = array<i64: 16, 32>}, {transform_indices = @transform_1, window_bounds = array<i64: 32, 96>}, {transform_indices = @transform_2, window_bounds = array<i64: 1, 96>}, {transform_indices = @transform_3, window_bounds = array<i64: 16, 96>}]} {
    %c0_i32 = arith.constant 0 : i32
    %0 = arith.cmpi eq, %arg2, %c0_i32 : i32
    %1 = arith.extui %0 : i1 to i32
    %c0_i32_0 = arith.constant 0 : i32
    %2 = arith.cmpi ne, %1, %c0_i32_0 : i32
    scf.if %2 {
      %cst_10 = arith.constant 0.000000e+00 : f32
      %12 = vector.broadcast %cst_10 : f32 to vector<16x96xf32>
      %c0_11 = arith.constant 0 : index
      %c0_12 = arith.constant 0 : index
      %13 = vector.load %arg7[%c0_11, %c0_12] : memref<16x96xf32, #tpu.memory_space<vmem>>, vector<16x96xf32>
      tpu.vector_store %arg7[%c0_11, %c0_12], %12 {strides = array<i32>} : memref<16x96xf32, #tpu.memory_space<vmem>>, vector<16x96xf32>,
    } else {
    }
    %c0 = arith.constant 0 : index
    %c0_1 = arith.constant 0 : index
    %3 = vector.load %arg7[%c0, %c0_1] : memref<16x96xf32, #tpu.memory_space<vmem>>, vector<16x96xf32>
    %c0_2 = arith.constant 0 : index
    %c0_3 = arith.constant 0 : index
    %4 = vector.load %arg3[%c0_2, %c0_3] : memref<16x32xbf16, #tpu.memory_space<vmem>>, vector<16x32xbf16>
    %c0_4 = arith.constant 0 : index
    %c0_5 = arith.constant 0 : index
    %5 = vector.load %arg4[%c0_4, %c0_5] : memref<32x96xbf16, #tpu.memory_space<vmem>>, vector<32x96xbf16>
    %cst = arith.constant dense<0.000000e+00> : vector<16x96xf32>
    %6 = tpu.matmul %4, %5, %cst {dimension_numbers = #tpu.dot_dimension_numbers<[1], [0], [0], [1], [0, 0, 1, 1], [], []>} : vector<16x32xbf16>, vector<32x96xbf16>, vector<16x96xf32> -> vector<16x96xf32>
    %7 = arith.addf %3, %6 : vector<16x96xf32>
    %c0_6 = arith.constant 0 : index
    %c0_7 = arith.constant 0 : index
    %8 = vector.load %arg7[%c0_6, %c0_7] : memref<16x96xf32, #tpu.memory_space<vmem>>, vector<16x96xf32>
    tpu.vector_store %arg7[%c0_6, %c0_7], %7 {strides = array<i32>} : memref<16x96xf32, #tpu.memory_space<vmem>>, vector<16x96xf32>,
    %c0_i32_8 = arith.constant 0 : i32
    %9 = arith.cmpi eq, %arg2, %c0_i32_8 : i32
    %10 = arith.extui %9 : i1 to i32
    %c0_i32_9 = arith.constant 0 : i32
    %11 = arith.cmpi ne, %10, %c0_i32_9 : i32
    scf.if %11 {
      %c0_10 = arith.constant 0 : index
      %c0_11 = arith.constant 0 : index
      %12 = vector.load %arg7[%c0_10, %c0_11] : memref<16x96xf32, #tpu.memory_space<vmem>>, vector<16x96xf32>
      %c0_12 = arith.constant 0 : index
      %c0_13 = arith.constant 0 : index
      %13 = vector.load %arg5[%c0_12, %c0_13] : memref<1x96xf32, #tpu.memory_space<vmem>>, vector<1x96xf32>
      %14 = vector.broadcast %13 : vector<1x96xf32> to vector<16x96xf32>
      %15 = arith.addf %12, %14 : vector<16x96xf32>
      %16 = arith.truncf %15 : vector<16x96xf32> to vector<16x96xbf16>
      %c0_14 = arith.constant 0 : index
      %c0_15 = arith.constant 0 : index
      %17 = vector.load %arg6[%c0_14, %c0_15] : memref<16x96xbf16, #tpu.memory_space<vmem>>, vector<16x96xbf16>
      tpu.vector_store %arg6[%c0_14, %c0_15], %16 {strides = array<i32>} : memref<16x96xbf16, #tpu.memory_space<vmem>>, vector<16x96xbf16>,
    } else {
    }
    return
  }
  func.func @transform_0(%arg0: i32, %arg1: i32, %arg2: i32) -> (i32, i32) {
    %c0_i32 = arith.constant 0 : i32
    return %arg0, %arg2 : i32, i32
  }
  func.func @transform_1(%arg0: i32, %arg1: i32, %arg2: i32) -> (i32, i32) {
    %c0_i32 = arith.constant 0 : i32
    return %arg2, %arg1 : i32, i32
  }
  func.func @transform_2(%arg0: i32, %arg1: i32, %arg2: i32) -> (i32, i32) {
    %c0_i32 = arith.constant 0 : i32
    %c0_i32_0 = arith.constant 0 : i32
    return %c0_i32, %arg1 : i32, i32
  }
  func.func @transform_3(%arg0: i32, %arg1: i32, %arg2: i32) -> (i32, i32) {
    %c0_i32 = arith.constant 0 : i32
    return %arg0, %arg1 : i32, i32
  }
}

module attributes {stable_mosaic.version = 11 : i64} {
  func.func @_attn_kernel(%arg0: i32, %arg1: i32, %arg2: memref<1x8x96xbf16, #tpu.memory_space<vmem>>, %arg3: memref<1x1x8xf32, #tpu.memory_space<vmem>>, %arg4: memref<1x8x32xbf16, #tpu.memory_space<vmem>>) attributes {dimension_semantics = [#tpu.dimension_semantics<parallel>, #tpu.dimension_semantics<parallel>], iteration_bounds = array<i64: 2, 1>, scalar_prefetch = 0 : i64, scratch_operands = 0 : i64, tpu.core_type = #tpu.core_type<tc>, window_params = [{transform_indices = @transform_0, window_bounds = array<i64: 1, 8, 96>}, {transform_indices = @transform_1, window_bounds = array<i64: 1, 1, 8>}, {transform_indices = @transform_2, window_bounds = array<i64: 1, 8, 32>}]} {
    %c8_i32 = arith.constant 8 : i32
    %0 = arith.muli %arg1, %c8_i32 : i32
    %1 = tpu.assume_multiple %0, 8 : i32
    %c0 = arith.constant 0 : index
    %c0_0 = arith.constant 0 : index
    %c0_1 = arith.constant 0 : index
    %2 = vector.load %arg3[%c0, %c0_0, %c0_1] : memref<1x1x8xf32, #tpu.memory_space<vmem>>, vector<1x1x8xf32>
    %3 = vector.shape_cast %2 : vector<1x1x8xf32> to vector<1x8xf32>
    %c0_2 = arith.constant 0 : index
    %4 = arith.index_cast %1 : i32 to index
    %c0_3 = arith.constant 0 : index
    %5 = vector.load %arg2[%c0_2, %4, %c0_3] : memref<1x8x96xbf16, #tpu.memory_space<vmem>>, vector<1x8x32xbf16>
    %6 = vector.shape_cast %5 : vector<1x8x32xbf16> to vector<8x32xbf16>
    %cst = arith.constant 2.500000e-01 : bf16
    %7 = vector.broadcast %cst : bf16 to vector<8x32xbf16>
    %8 = arith.mulf %6, %7 : vector<8x32xbf16>
    %c0_4 = arith.constant 0 : index
    %c0_5 = arith.constant 0 : index
    %c32 = arith.constant 32 : index
    %9 = vector.load %arg2[%c0_4, %c0_5, %c32] : memref<1x8x96xbf16, #tpu.memory_space<vmem>>, vector<1x8x32xbf16>
    %10 = vector.shape_cast %9 : vector<1x8x32xbf16> to vector<8x32xbf16>
    %c0_6 = arith.constant 0 : index
    %c0_7 = arith.constant 0 : index
    %c64 = arith.constant 64 : index
    %11 = vector.load %arg2[%c0_6, %c0_7, %c64] : memref<1x8x96xbf16, #tpu.memory_space<vmem>>, vector<1x8x32xbf16>
    %12 = vector.shape_cast %11 : vector<1x8x32xbf16> to vector<8x32xbf16>
    %13 = vector.extract_strided_slice %8 {offsets = [0, 0], sizes = [8, 16], strides = [1, 1]} : vector<8x32xbf16> to vector<8x16xbf16>
    %14 = vector.extract_strided_slice %10 {offsets = [0, 0], sizes = [8, 16], strides = [1, 1]} : vector<8x32xbf16> to vector<8x16xbf16>
    %15 = vector.extract_strided_slice %12 {offsets = [0, 0], sizes = [8, 16], strides = [1, 1]} : vector<8x32xbf16> to vector<8x16xbf16>
    %cst_8 = arith.constant dense<0.000000e+00> : vector<8x8xf32>
    %16 = tpu.matmul %13, %14, %cst_8 {dimension_numbers = #tpu.dot_dimension_numbers<[1], [1], [0], [0], [0, 0, 1, 0], [], []>} : vector<8x16xbf16>, vector<8x16xbf16>, vector<8x8xf32> -> vector<8x8xf32>
    %17 = vector.broadcast %3 : vector<1x8xf32> to vector<8x8xf32>
    %18 = arith.addf %16, %17 : vector<8x8xf32>
    %cst_9 = arith.constant dense<0xFF800000> : vector<8xf32>
    %19 = vector.multi_reduction <maximumf>, %18, %cst_9 [1] : vector<8x8xf32> to vector<8xf32>
    %20 = vector.shape_cast %19 : vector<8xf32> to vector<8x1xf32>
    %21 = vector.broadcast %20 : vector<8x1xf32> to vector<8x8xf32>
    %22 = arith.subf %18, %21 : vector<8x8xf32>
    %23 = math.exp %22 : vector<8x8xf32>
    %cst_10 = arith.constant dense<0.000000e+00> : vector<8xf32>
    %24 = vector.multi_reduction <add>, %23, %cst_10 [1] : vector<8x8xf32> to vector<8xf32>
    %25 = vector.shape_cast %24 : vector<8xf32> to vector<8x1xf32>
    %26 = tpu.reciprocal %25 {approx = true} : vector<8x1xf32> -> vector<8x1xf32>
    %27 = vector.broadcast %26 : vector<8x1xf32> to vector<8x8xf32>
    %28 = arith.mulf %23, %27 : vector<8x8xf32>
    %29 = arith.truncf %28 : vector<8x8xf32> to vector<8x8xbf16>
    %cst_11 = arith.constant dense<0.000000e+00> : vector<8x16xf32>
    %30 = tpu.matmul %29, %15, %cst_11 {dimension_numbers = #tpu.dot_dimension_numbers<[1], [0], [0], [1], [0, 0, 1, 1], [], []>} : vector<8x8xbf16>, vector<8x16xbf16>, vector<8x16xf32> -> vector<8x16xf32>
    %31 = vector.extract_strided_slice %8 {offsets = [0, 16], sizes = [8, 16], strides = [1, 1]} : vector<8x32xbf16> to vector<8x16xbf16>
    %32 = vector.extract_strided_slice %10 {offsets = [0, 16], sizes = [8, 16], strides = [1, 1]} : vector<8x32xbf16> to vector<8x16xbf16>
    %33 = vector.extract_strided_slice %12 {offsets = [0, 16], sizes = [8, 16], strides = [1, 1]} : vector<8x32xbf16> to vector<8x16xbf16>
    %cst_12 = arith.constant dense<0.000000e+00> : vector<8x8xf32>
    %34 = tpu.matmul %31, %32, %cst_12 {dimension_numbers = #tpu.dot_dimension_numbers<[1], [1], [0], [0], [0, 0, 1, 0], [], []>} : vector<8x16xbf16>, vector<8x16xbf16>, vector<8x8xf32> -> vector<8x8xf32>
    %35 = vector.broadcast %3 : vector<1x8xf32> to vector<8x8xf32>
    %36 = arith.addf %34, %35 : vector<8x8xf32>
    %cst_13 = arith.constant dense<0xFF800000> : vector<8xf32>
    %37 = vector.multi_reduction <maximumf>, %36, %cst_13 [1] : vector<8x8xf32> to vector<8xf32>
    %38 = vector.shape_cast %37 : vector<8xf32> to vector<8x1xf32>
    %39 = vector.broadcast %38 : vector<8x1xf32> to vector<8x8xf32>
    %40 = arith.subf %36, %39 : vector<8x8xf32>
    %41 = math.exp %40 : vector<8x8xf32>
    %cst_14 = arith.constant dense<0.000000e+00> : vector<8xf32>
    %42 = vector.multi_reduction <add>, %41, %cst_14 [1] : vector<8x8xf32> to vector<8xf32>
    %43 = vector.shape_cast %42 : vector<8xf32> to vector<8x1xf32>
    %44 = tpu.reciprocal %43 {approx = true} : vector<8x1xf32> -> vector<8x1xf32>
    %45 = vector.broadcast %44 : vector<8x1xf32> to vector<8x8xf32>
    %46 = arith.mulf %41, %45 : vector<8x8xf32>
    %47 = arith.truncf %46 : vector<8x8xf32> to vector<8x8xbf16>
    %cst_15 = arith.constant dense<0.000000e+00> : vector<8x16xf32>
    %48 = tpu.matmul %47, %33, %cst_15 {dimension_numbers = #tpu.dot_dimension_numbers<[1], [0], [0], [1], [0, 0, 1, 1], [], []>} : vector<8x8xbf16>, vector<8x16xbf16>, vector<8x16xf32> -> vector<8x16xf32>
    %49 = tpu.concatenate %30, %48 in 1 : vector<8x16xf32>, vector<8x16xf32> -> vector<8x32xf32>
    %50 = arith.truncf %49 : vector<8x32xf32> to vector<8x32xbf16>
    %c0_16 = arith.constant 0 : index
    %c0_17 = arith.constant 0 : index
    %c0_18 = arith.constant 0 : index
    %51 = vector.load %arg4[%c0_16, %c0_17, %c0_18] : memref<1x8x32xbf16, #tpu.memory_space<vmem>>, vector<1x8x32xbf16>
    %52 = vector.shape_cast %51 : vector<1x8x32xbf16> to vector<8x32xbf16>
    %53 = vector.shape_cast %50 : vector<8x32xbf16> to vector<1x8x32xbf16>
    tpu.vector_store %arg4[%c0_16, %c0_17, %c0_18], %53 {strides = array<i32>} : memref<1x8x32xbf16, #tpu.memory_space<vmem>>, vector<1x8x32xbf16>,
    return
  }
  func.func @transform_0(%arg0: i32, %arg1: i32) -> (i32, i32, i32) {
    %c0_i32 = arith.constant 0 : i32
    %c0_i32_0 = arith.constant 0 : i32
    %c0_i32_1 = arith.constant 0 : i32
    return %arg0, %c0_i32, %c0_i32_0 : i32, i32, i32
  }
  func.func @transform_1(%arg0: i32, %arg1: i32) -> (i32, i32, i32) {
    %c0_i32 = arith.constant 0 : i32
    %c0_i32_0 = arith.constant 0 : i32
    %c0_i32_1 = arith.constant 0 : i32
    return %arg0, %c0_i32, %c0_i32_0 : i32, i32, i32
  }
  func.func @transform_2(%arg0: i32, %arg1: i32) -> (i32, i32, i32) {
    %c0_i32 = arith.constant 0 : i32
    %c0_i32_0 = arith.constant 0 : i32
    return %arg0, %arg1, %c0_i32 : i32, i32, i32
  }
}

module attributes {stable_mosaic.version = 11 : i64} {
  func.func @_proj_res_ln_kernel(%arg0: i32, %arg1: memref<16x32xbf16, #tpu.memory_space<vmem>>, %arg2: memref<16x32xbf16, #tpu.memory_space<vmem>>, %arg3: memref<32x32xbf16, #tpu.memory_space<vmem>>, %arg4: memref<1x32xf32, #tpu.memory_space<vmem>>, %arg5: memref<1x32xf32, #tpu.memory_space<vmem>>, %arg6: memref<1x32xf32, #tpu.memory_space<vmem>>, %arg7: memref<16x32xbf16, #tpu.memory_space<vmem>>) attributes {dimension_semantics = [#tpu.dimension_semantics<parallel>], iteration_bounds = array<i64: 1>, scalar_prefetch = 0 : i64, scratch_operands = 0 : i64, tpu.core_type = #tpu.core_type<tc>, window_params = [{transform_indices = @transform_0, window_bounds = array<i64: 16, 32>}, {transform_indices = @transform_1, window_bounds = array<i64: 16, 32>}, {pipeline_mode = #tpu.pipeline_mode<synchronous>, transform_indices = @transform_2, window_bounds = array<i64: 32, 32>}, {pipeline_mode = #tpu.pipeline_mode<synchronous>, transform_indices = @transform_3, window_bounds = array<i64: 1, 32>}, {pipeline_mode = #tpu.pipeline_mode<synchronous>, transform_indices = @transform_4, window_bounds = array<i64: 1, 32>}, {pipeline_mode = #tpu.pipeline_mode<synchronous>, transform_indices = @transform_5, window_bounds = array<i64: 1, 32>}, {transform_indices = @transform_6, window_bounds = array<i64: 16, 32>}]} {
    %c0 = arith.constant 0 : index
    %c0_0 = arith.constant 0 : index
    %0 = vector.load %arg1[%c0, %c0_0] : memref<16x32xbf16, #tpu.memory_space<vmem>>, vector<16x32xbf16>
    %c0_1 = arith.constant 0 : index
    %c0_2 = arith.constant 0 : index
    %1 = vector.load %arg3[%c0_1, %c0_2] : memref<32x32xbf16, #tpu.memory_space<vmem>>, vector<32x32xbf16>
    %cst = arith.constant dense<0.000000e+00> : vector<16x32xf32>
    %2 = tpu.matmul %0, %1, %cst {dimension_numbers = #tpu.dot_dimension_numbers<[1], [0], [0], [1], [0, 0, 1, 1], [], []>} : vector<16x32xbf16>, vector<32x32xbf16>, vector<16x32xf32> -> vector<16x32xf32>
    %c0_3 = arith.constant 0 : index
    %c0_4 = arith.constant 0 : index
    %3 = vector.load %arg4[%c0_3, %c0_4] : memref<1x32xf32, #tpu.memory_space<vmem>>, vector<1x32xf32>
    %4 = vector.broadcast %3 : vector<1x32xf32> to vector<16x32xf32>
    %5 = arith.addf %2, %4 : vector<16x32xf32>
    %c0_5 = arith.constant 0 : index
    %c0_6 = arith.constant 0 : index
    %6 = vector.load %arg2[%c0_5, %c0_6] : memref<16x32xbf16, #tpu.memory_space<vmem>>, vector<16x32xbf16>
    %7 = arith.extf %6 : vector<16x32xbf16> to vector<16x32xf32>
    %8 = arith.addf %5, %7 : vector<16x32xf32>
    %cst_7 = arith.constant dense<0.000000e+00> : vector<16xf32>
    %9 = vector.multi_reduction <add>, %8, %cst_7 [1] : vector<16x32xf32> to vector<16xf32>
    %10 = vector.shape_cast %9 : vector<16xf32> to vector<16x1xf32>
    %cst_8 = arith.constant 3.200000e+01 : f32
    %11 = vector.broadcast %cst_8 : f32 to vector<16x1xf32>
    %12 = arith.divf %10, %11 : vector<16x1xf32>
    %13 = vector.broadcast %12 : vector<16x1xf32> to vector<16x32xf32>
    %14 = arith.subf %8, %13 : vector<16x32xf32>
    %15 = arith.mulf %14, %14 : vector<16x32xf32>
    %cst_9 = arith.constant dense<0.000000e+00> : vector<16xf32>
    %16 = vector.multi_reduction <add>, %15, %cst_9 [1] : vector<16x32xf32> to vector<16xf32>
    %17 = vector.shape_cast %16 : vector<16xf32> to vector<16x1xf32>
    %cst_10 = arith.constant 3.200000e+01 : f32
    %18 = vector.broadcast %cst_10 : f32 to vector<16x1xf32>
    %19 = arith.divf %17, %18 : vector<16x1xf32>
    %cst_11 = arith.constant 9.99999996E-13 : f32
    %20 = vector.broadcast %cst_11 : f32 to vector<16x1xf32>
    %21 = arith.addf %19, %20 : vector<16x1xf32>
    %22 = math.rsqrt %21 : vector<16x1xf32>
    %23 = vector.broadcast %22 : vector<16x1xf32> to vector<16x32xf32>
    %24 = arith.mulf %14, %23 : vector<16x32xf32>
    %c0_12 = arith.constant 0 : index
    %c0_13 = arith.constant 0 : index
    %25 = vector.load %arg5[%c0_12, %c0_13] : memref<1x32xf32, #tpu.memory_space<vmem>>, vector<1x32xf32>
    %26 = vector.broadcast %25 : vector<1x32xf32> to vector<16x32xf32>
    %27 = arith.mulf %24, %26 : vector<16x32xf32>
    %c0_14 = arith.constant 0 : index
    %c0_15 = arith.constant 0 : index
    %28 = vector.load %arg6[%c0_14, %c0_15] : memref<1x32xf32, #tpu.memory_space<vmem>>, vector<1x32xf32>
    %29 = vector.broadcast %28 : vector<1x32xf32> to vector<16x32xf32>
    %30 = arith.addf %27, %29 : vector<16x32xf32>
    %31 = arith.truncf %30 : vector<16x32xf32> to vector<16x32xbf16>
    %c0_16 = arith.constant 0 : index
    %c0_17 = arith.constant 0 : index
    %32 = vector.load %arg7[%c0_16, %c0_17] : memref<16x32xbf16, #tpu.memory_space<vmem>>, vector<16x32xbf16>
    tpu.vector_store %arg7[%c0_16, %c0_17], %31 {strides = array<i32>} : memref<16x32xbf16, #tpu.memory_space<vmem>>, vector<16x32xbf16>,
    return
  }
  func.func @transform_0(%arg0: i32) -> (i32, i32) {
    %c0_i32 = arith.constant 0 : i32
    %c0_i32_0 = arith.constant 0 : i32
    return %arg0, %c0_i32 : i32, i32
  }
  func.func @transform_1(%arg0: i32) -> (i32, i32) {
    %c0_i32 = arith.constant 0 : i32
    %c0_i32_0 = arith.constant 0 : i32
    return %arg0, %c0_i32 : i32, i32
  }
  func.func @transform_2(%arg0: i32) -> (i32, i32) {
    %c0_i32 = arith.constant 0 : i32
    %c0_i32_0 = arith.constant 0 : i32
    %c0_i32_1 = arith.constant 0 : i32
    return %c0_i32, %c0_i32_0 : i32, i32
  }
  func.func @transform_3(%arg0: i32) -> (i32, i32) {
    %c0_i32 = arith.constant 0 : i32
    %c0_i32_0 = arith.constant 0 : i32
    %c0_i32_1 = arith.constant 0 : i32
    return %c0_i32, %c0_i32_0 : i32, i32
  }
  func.func @transform_4(%arg0: i32) -> (i32, i32) {
    %c0_i32 = arith.constant 0 : i32
    %c0_i32_0 = arith.constant 0 : i32
    %c0_i32_1 = arith.constant 0 : i32
    return %c0_i32, %c0_i32_0 : i32, i32
  }
  func.func @transform_5(%arg0: i32) -> (i32, i32) {
    %c0_i32 = arith.constant 0 : i32
    %c0_i32_0 = arith.constant 0 : i32
    %c0_i32_1 = arith.constant 0 : i32
    return %c0_i32, %c0_i32_0 : i32, i32
  }
  func.func @transform_6(%arg0: i32) -> (i32, i32) {
    %c0_i32 = arith.constant 0 : i32
    %c0_i32_0 = arith.constant 0 : i32
    return %arg0, %c0_i32 : i32, i32
  }
}

module attributes {stable_mosaic.version = 11 : i64} {
  func.func @_ffn_res_ln_kernel(%arg0: i32, %arg1: memref<16x32xbf16, #tpu.memory_space<vmem>>, %arg2: memref<32x64xbf16, #tpu.memory_space<vmem>>, %arg3: memref<1x64xf32, #tpu.memory_space<vmem>>, %arg4: memref<64x32xbf16, #tpu.memory_space<vmem>>, %arg5: memref<1x32xf32, #tpu.memory_space<vmem>>, %arg6: memref<1x32xf32, #tpu.memory_space<vmem>>, %arg7: memref<1x32xf32, #tpu.memory_space<vmem>>, %arg8: memref<16x32xbf16, #tpu.memory_space<vmem>>) attributes {dimension_semantics = [#tpu.dimension_semantics<parallel>], iteration_bounds = array<i64: 1>, scalar_prefetch = 0 : i64, scratch_operands = 0 : i64, tpu.core_type = #tpu.core_type<tc>, window_params = [{transform_indices = @transform_0, window_bounds = array<i64: 16, 32>}, {pipeline_mode = #tpu.pipeline_mode<synchronous>, transform_indices = @transform_1, window_bounds = array<i64: 32, 64>}, {pipeline_mode = #tpu.pipeline_mode<synchronous>, transform_indices = @transform_2, window_bounds = array<i64: 1, 64>}, {pipeline_mode = #tpu.pipeline_mode<synchronous>, transform_indices = @transform_3, window_bounds = array<i64: 64, 32>}, {pipeline_mode = #tpu.pipeline_mode<synchronous>, transform_indices = @transform_4, window_bounds = array<i64: 1, 32>}, {pipeline_mode = #tpu.pipeline_mode<synchronous>, transform_indices = @transform_5, window_bounds = array<i64: 1, 32>}, {pipeline_mode = #tpu.pipeline_mode<synchronous>, transform_indices = @transform_6, window_bounds = array<i64: 1, 32>}, {transform_indices = @transform_7, window_bounds = array<i64: 16, 32>}]} {
    %c0 = arith.constant 0 : index
    %c0_0 = arith.constant 0 : index
    %0 = vector.load %arg1[%c0, %c0_0] : memref<16x32xbf16, #tpu.memory_space<vmem>>, vector<16x32xbf16>
    %1 = arith.extf %0 : vector<16x32xbf16> to vector<16x32xf32>
    %c0_1 = arith.constant 0 : index
    %c0_2 = arith.constant 0 : index
    %2 = vector.load %arg5[%c0_1, %c0_2] : memref<1x32xf32, #tpu.memory_space<vmem>>, vector<1x32xf32>
    %3 = vector.broadcast %2 : vector<1x32xf32> to vector<16x32xf32>
    %4 = arith.addf %1, %3 : vector<16x32xf32>
    %c0_3 = arith.constant 0 : index
    %c0_4 = arith.constant 0 : index
    %5 = vector.load %arg2[%c0_3, %c0_4] : memref<32x64xbf16, #tpu.memory_space<vmem>>, vector<32x64xbf16>
    %c0_5 = arith.constant 0 : index
    %c0_6 = arith.constant 0 : index
    %6 = vector.load %arg3[%c0_5, %c0_6] : memref<1x64xf32, #tpu.memory_space<vmem>>, vector<1x64xf32>
    %cst = arith.constant dense<0.000000e+00> : vector<16x64xf32>
    %7 = tpu.matmul %0, %5, %cst {dimension_numbers = #tpu.dot_dimension_numbers<[1], [0], [0], [1], [0, 0, 1, 1], [], []>} : vector<16x32xbf16>, vector<32x64xbf16>, vector<16x64xf32> -> vector<16x64xf32>
    %8 = vector.broadcast %6 : vector<1x64xf32> to vector<16x64xf32>
    %9 = arith.addf %7, %8 : vector<16x64xf32>
    %cst_7 = arith.constant 5.000000e-01 : f32
    %10 = vector.broadcast %cst_7 : f32 to vector<16x64xf32>
    %11 = arith.mulf %10, %9 : vector<16x64xf32>
    %cst_8 = arith.constant 4.471500e-02 : f32
    %12 = vector.broadcast %cst_8 : f32 to vector<16x64xf32>
    %13 = arith.mulf %12, %9 : vector<16x64xf32>
    %14 = arith.mulf %13, %9 : vector<16x64xf32>
    %15 = arith.mulf %14, %9 : vector<16x64xf32>
    %16 = arith.addf %9, %15 : vector<16x64xf32>
    %cst_9 = arith.constant 0.797884583 : f32
    %17 = vector.broadcast %cst_9 : f32 to vector<16x64xf32>
    %18 = arith.mulf %17, %16 : vector<16x64xf32>
    %19 = math.tanh %18 : vector<16x64xf32>
    %cst_10 = arith.constant 1.000000e+00 : f32
    %20 = vector.broadcast %cst_10 : f32 to vector<16x64xf32>
    %21 = arith.addf %20, %19 : vector<16x64xf32>
    %22 = arith.mulf %11, %21 : vector<16x64xf32>
    %23 = arith.truncf %22 : vector<16x64xf32> to vector<16x64xbf16>
    %c0_11 = arith.constant 0 : index
    %c0_12 = arith.constant 0 : index
    %24 = vector.load %arg4[%c0_11, %c0_12] : memref<64x32xbf16, #tpu.memory_space<vmem>>, vector<64x32xbf16>
    %cst_13 = arith.constant dense<0.000000e+00> : vector<16x32xf32>
    %25 = tpu.matmul %23, %24, %cst_13 {dimension_numbers = #tpu.dot_dimension_numbers<[1], [0], [0], [1], [0, 0, 1, 1], [], []>} : vector<16x64xbf16>, vector<64x32xbf16>, vector<16x32xf32> -> vector<16x32xf32>
    %26 = arith.addf %4, %25 : vector<16x32xf32>
    %cst_14 = arith.constant dense<0.000000e+00> : vector<16xf32>
    %27 = vector.multi_reduction <add>, %26, %cst_14 [1] : vector<16x32xf32> to vector<16xf32>
    %28 = vector.shape_cast %27 : vector<16xf32> to vector<16x1xf32>
    %cst_15 = arith.constant 3.200000e+01 : f32
    %29 = vector.broadcast %cst_15 : f32 to vector<16x1xf32>
    %30 = arith.divf %28, %29 : vector<16x1xf32>
    %31 = vector.broadcast %30 : vector<16x1xf32> to vector<16x32xf32>
    %32 = arith.subf %26, %31 : vector<16x32xf32>
    %33 = arith.mulf %32, %32 : vector<16x32xf32>
    %cst_16 = arith.constant dense<0.000000e+00> : vector<16xf32>
    %34 = vector.multi_reduction <add>, %33, %cst_16 [1] : vector<16x32xf32> to vector<16xf32>
    %35 = vector.shape_cast %34 : vector<16xf32> to vector<16x1xf32>
    %cst_17 = arith.constant 3.200000e+01 : f32
    %36 = vector.broadcast %cst_17 : f32 to vector<16x1xf32>
    %37 = arith.divf %35, %36 : vector<16x1xf32>
    %cst_18 = arith.constant 9.99999996E-13 : f32
    %38 = vector.broadcast %cst_18 : f32 to vector<16x1xf32>
    %39 = arith.addf %37, %38 : vector<16x1xf32>
    %40 = math.rsqrt %39 : vector<16x1xf32>
    %41 = vector.broadcast %40 : vector<16x1xf32> to vector<16x32xf32>
    %42 = arith.mulf %32, %41 : vector<16x32xf32>
    %c0_19 = arith.constant 0 : index
    %c0_20 = arith.constant 0 : index
    %43 = vector.load %arg6[%c0_19, %c0_20] : memref<1x32xf32, #tpu.memory_space<vmem>>, vector<1x32xf32>
    %44 = vector.broadcast %43 : vector<1x32xf32> to vector<16x32xf32>
    %45 = arith.mulf %42, %44 : vector<16x32xf32>
    %c0_21 = arith.constant 0 : index
    %c0_22 = arith.constant 0 : index
    %46 = vector.load %arg7[%c0_21, %c0_22] : memref<1x32xf32, #tpu.memory_space<vmem>>, vector<1x32xf32>
    %47 = vector.broadcast %46 : vector<1x32xf32> to vector<16x32xf32>
    %48 = arith.addf %45, %47 : vector<16x32xf32>
    %49 = arith.truncf %48 : vector<16x32xf32> to vector<16x32xbf16>
    %c0_23 = arith.constant 0 : index
    %c0_24 = arith.constant 0 : index
    %50 = vector.load %arg8[%c0_23, %c0_24] : memref<16x32xbf16, #tpu.memory_space<vmem>>, vector<16x32xbf16>
    tpu.vector_store %arg8[%c0_23, %c0_24], %49 {strides = array<i32>} : memref<16x32xbf16, #tpu.memory_space<vmem>>, vector<16x32xbf16>,
    return
  }
  func.func @transform_0(%arg0: i32) -> (i32, i32) {
    %c0_i32 = arith.constant 0 : i32
    %c0_i32_0 = arith.constant 0 : i32
    return %arg0, %c0_i32 : i32, i32
  }
  func.func @transform_1(%arg0: i32) -> (i32, i32) {
    %c0_i32 = arith.constant 0 : i32
    %c0_i32_0 = arith.constant 0 : i32
    %c0_i32_1 = arith.constant 0 : i32
    return %c0_i32, %c0_i32_0 : i32, i32
  }
  func.func @transform_2(%arg0: i32) -> (i32, i32) {
    %c0_i32 = arith.constant 0 : i32
    %c0_i32_0 = arith.constant 0 : i32
    %c0_i32_1 = arith.constant 0 : i32
    return %c0_i32, %c0_i32_0 : i32, i32
  }
  func.func @transform_3(%arg0: i32) -> (i32, i32) {
    %c0_i32 = arith.constant 0 : i32
    %c0_i32_0 = arith.constant 0 : i32
    %c0_i32_1 = arith.constant 0 : i32
    return %c0_i32, %c0_i32_0 : i32, i32
  }
  func.func @transform_4(%arg0: i32) -> (i32, i32) {
    %c0_i32 = arith.constant 0 : i32
    %c0_i32_0 = arith.constant 0 : i32
    %c0_i32_1 = arith.constant 0 : i32
    return %c0_i32, %c0_i32_0 : i32, i32
  }
  func.func @transform_5(%arg0: i32) -> (i32, i32) {
    %c0_i32 = arith.constant 0 : i32
    %c0_i32_0 = arith.constant 0 : i32
    %c0_i32_1 = arith.constant 0 : i32
    return %c0_i32, %c0_i32_0 : i32, i32
  }
  func.func @transform_6(%arg0: i32) -> (i32, i32) {
    %c0_i32 = arith.constant 0 : i32
    %c0_i32_0 = arith.constant 0 : i32
    %c0_i32_1 = arith.constant 0 : i32
    return %c0_i32, %c0_i32_0 : i32, i32
  }
  func.func @transform_7(%arg0: i32) -> (i32, i32) {
    %c0_i32 = arith.constant 0 : i32
    %c0_i32_0 = arith.constant 0 : i32
    return %arg0, %c0_i32 : i32, i32
  }
}

module attributes {stable_mosaic.version = 11 : i64} {
  func.func @_head_kernel(%arg0: memref<2x32xf32, #tpu.memory_space<vmem>>, %arg1: memref<2x6x16xf32, #tpu.memory_space<vmem>>, %arg2: memref<48x48xf32, #tpu.memory_space<vmem>>, %arg3: memref<1x48xf32, #tpu.memory_space<vmem>>, %arg4: memref<48x3xf32, #tpu.memory_space<vmem>>, %arg5: memref<1x3xf32, #tpu.memory_space<vmem>>, %arg6: memref<2x3xf32, #tpu.memory_space<vmem>>) attributes {dimension_semantics = [], scalar_prefetch = 0 : i64, scratch_operands = 0 : i64, tpu.core_type = #tpu.core_type<tc>} {
    %c0 = arith.constant 0 : index
    %c0_0 = arith.constant 0 : index
    %c0_1 = arith.constant 0 : index
    %0 = vector.load %arg1[%c0, %c0_0, %c0_1] : memref<2x6x16xf32, #tpu.memory_space<vmem>>, vector<2x6x16xf32>
    %cst = arith.constant dense<0.000000e+00> : vector<2x16xf32>
    %1 = vector.multi_reduction <add>, %0, %cst [1] : vector<2x6x16xf32> to vector<2x16xf32>
    %cst_2 = arith.constant 6.000000e+00 : f32
    %2 = vector.broadcast %cst_2 : f32 to vector<2x16xf32>
    %3 = arith.divf %1, %2 : vector<2x16xf32>
    %c0_3 = arith.constant 0 : index
    %c0_4 = arith.constant 0 : index
    %4 = vector.load %arg0[%c0_3, %c0_4] : memref<2x32xf32, #tpu.memory_space<vmem>>, vector<2x32xf32>
    %c0_5 = arith.constant 0 : index
    %c0_6 = arith.constant 0 : index
    %5 = vector.load %arg2[%c0_5, %c0_6] : memref<48x48xf32, #tpu.memory_space<vmem>>, vector<32x48xf32>
    %c32 = arith.constant 32 : index
    %c0_7 = arith.constant 0 : index
    %6 = vector.load %arg2[%c32, %c0_7] : memref<48x48xf32, #tpu.memory_space<vmem>>, vector<16x48xf32>
    %cst_8 = arith.constant dense<0.000000e+00> : vector<2x48xf32>
    %7 = tpu.matmul %4, %5, %cst_8 {dimension_numbers = #tpu.dot_dimension_numbers<[1], [0], [0], [1], [0, 0, 1, 1], [], []>} : vector<2x32xf32>, vector<32x48xf32>, vector<2x48xf32> -> vector<2x48xf32>
    %cst_9 = arith.constant dense<0.000000e+00> : vector<2x48xf32>
    %8 = tpu.matmul %3, %6, %cst_9 {dimension_numbers = #tpu.dot_dimension_numbers<[1], [0], [0], [1], [0, 0, 1, 1], [], []>} : vector<2x16xf32>, vector<16x48xf32>, vector<2x48xf32> -> vector<2x48xf32>
    %9 = arith.addf %7, %8 : vector<2x48xf32>
    %c0_10 = arith.constant 0 : index
    %c0_11 = arith.constant 0 : index
    %10 = vector.load %arg3[%c0_10, %c0_11] : memref<1x48xf32, #tpu.memory_space<vmem>>, vector<1x48xf32>
    %11 = vector.broadcast %10 : vector<1x48xf32> to vector<2x48xf32>
    %12 = arith.addf %9, %11 : vector<2x48xf32>
    %13 = math.tanh %12 : vector<2x48xf32>
    %c0_12 = arith.constant 0 : index
    %c0_13 = arith.constant 0 : index
    %14 = vector.load %arg4[%c0_12, %c0_13] : memref<48x3xf32, #tpu.memory_space<vmem>>, vector<48x3xf32>
    %cst_14 = arith.constant dense<0.000000e+00> : vector<2x3xf32>
    %15 = tpu.matmul %13, %14, %cst_14 {dimension_numbers = #tpu.dot_dimension_numbers<[1], [0], [0], [1], [0, 0, 1, 1], [], []>} : vector<2x48xf32>, vector<48x3xf32>, vector<2x3xf32> -> vector<2x3xf32>
    %c0_15 = arith.constant 0 : index
    %c0_16 = arith.constant 0 : index
    %16 = vector.load %arg5[%c0_15, %c0_16] : memref<1x3xf32, #tpu.memory_space<vmem>>, vector<1x3xf32>
    %17 = vector.broadcast %16 : vector<1x3xf32> to vector<2x3xf32>
    %18 = arith.addf %15, %17 : vector<2x3xf32>
    %c0_17 = arith.constant 0 : index
    %c0_18 = arith.constant 0 : index
    %19 = vector.load %arg6[%c0_17, %c0_18] : memref<2x3xf32, #tpu.memory_space<vmem>>, vector<2x3xf32>
    tpu.vector_store %arg6[%c0_17, %c0_18], %18 {strides = array<i32>} : memref<2x3xf32, #tpu.memory_space<vmem>>, vector<2x3xf32>,
    return
  }
}

module attributes {stable_mosaic.version = 11 : i64} {
  func.func @_linear_kernel(%arg0: i32, %arg1: i32, %arg2: i32, %arg3: memref<2x32xbf16, #tpu.memory_space<vmem>>, %arg4: memref<32x32xbf16, #tpu.memory_space<vmem>>, %arg5: memref<1x32xf32, #tpu.memory_space<vmem>>, %arg6: memref<2x32xf32, #tpu.memory_space<vmem>>, %arg7: memref<2x32xf32, #tpu.memory_space<vmem>>) attributes {dimension_semantics = [#tpu.dimension_semantics<parallel>, #tpu.dimension_semantics<parallel>, #tpu.dimension_semantics<arbitrary>], iteration_bounds = array<i64: 1, 1, 1>, scalar_prefetch = 0 : i64, scratch_operands = 1 : i64, tpu.core_type = #tpu.core_type<tc>, window_params = [{transform_indices = @transform_0, window_bounds = array<i64: 2, 32>}, {transform_indices = @transform_1, window_bounds = array<i64: 32, 32>}, {transform_indices = @transform_2, window_bounds = array<i64: 1, 32>}, {transform_indices = @transform_3, window_bounds = array<i64: 2, 32>}]} {
    %c0_i32 = arith.constant 0 : i32
    %0 = arith.cmpi eq, %arg2, %c0_i32 : i32
    %1 = arith.extui %0 : i1 to i32
    %c0_i32_0 = arith.constant 0 : i32
    %2 = arith.cmpi ne, %1, %c0_i32_0 : i32
    scf.if %2 {
      %cst_10 = arith.constant 0.000000e+00 : f32
      %12 = vector.broadcast %cst_10 : f32 to vector<2x32xf32>
      %c0_11 = arith.constant 0 : index
      %c0_12 = arith.constant 0 : index
      %13 = vector.load %arg7[%c0_11, %c0_12] : memref<2x32xf32, #tpu.memory_space<vmem>>, vector<2x32xf32>
      tpu.vector_store %arg7[%c0_11, %c0_12], %12 {strides = array<i32>} : memref<2x32xf32, #tpu.memory_space<vmem>>, vector<2x32xf32>,
    } else {
    }
    %c0 = arith.constant 0 : index
    %c0_1 = arith.constant 0 : index
    %3 = vector.load %arg7[%c0, %c0_1] : memref<2x32xf32, #tpu.memory_space<vmem>>, vector<2x32xf32>
    %c0_2 = arith.constant 0 : index
    %c0_3 = arith.constant 0 : index
    %4 = vector.load %arg3[%c0_2, %c0_3] : memref<2x32xbf16, #tpu.memory_space<vmem>>, vector<2x32xbf16>
    %c0_4 = arith.constant 0 : index
    %c0_5 = arith.constant 0 : index
    %5 = vector.load %arg4[%c0_4, %c0_5] : memref<32x32xbf16, #tpu.memory_space<vmem>>, vector<32x32xbf16>
    %cst = arith.constant dense<0.000000e+00> : vector<2x32xf32>
    %6 = tpu.matmul %4, %5, %cst {dimension_numbers = #tpu.dot_dimension_numbers<[1], [0], [0], [1], [0, 0, 1, 1], [], []>} : vector<2x32xbf16>, vector<32x32xbf16>, vector<2x32xf32> -> vector<2x32xf32>
    %7 = arith.addf %3, %6 : vector<2x32xf32>
    %c0_6 = arith.constant 0 : index
    %c0_7 = arith.constant 0 : index
    %8 = vector.load %arg7[%c0_6, %c0_7] : memref<2x32xf32, #tpu.memory_space<vmem>>, vector<2x32xf32>
    tpu.vector_store %arg7[%c0_6, %c0_7], %7 {strides = array<i32>} : memref<2x32xf32, #tpu.memory_space<vmem>>, vector<2x32xf32>,
    %c0_i32_8 = arith.constant 0 : i32
    %9 = arith.cmpi eq, %arg2, %c0_i32_8 : i32
    %10 = arith.extui %9 : i1 to i32
    %c0_i32_9 = arith.constant 0 : i32
    %11 = arith.cmpi ne, %10, %c0_i32_9 : i32
    scf.if %11 {
      %c0_10 = arith.constant 0 : index
      %c0_11 = arith.constant 0 : index
      %12 = vector.load %arg7[%c0_10, %c0_11] : memref<2x32xf32, #tpu.memory_space<vmem>>, vector<2x32xf32>
      %c0_12 = arith.constant 0 : index
      %c0_13 = arith.constant 0 : index
      %13 = vector.load %arg5[%c0_12, %c0_13] : memref<1x32xf32, #tpu.memory_space<vmem>>, vector<1x32xf32>
      %14 = vector.broadcast %13 : vector<1x32xf32> to vector<2x32xf32>
      %15 = arith.addf %12, %14 : vector<2x32xf32>
      %16 = math.tanh %15 : vector<2x32xf32>
      %c0_14 = arith.constant 0 : index
      %c0_15 = arith.constant 0 : index
      %17 = vector.load %arg6[%c0_14, %c0_15] : memref<2x32xf32, #tpu.memory_space<vmem>>, vector<2x32xf32>
      tpu.vector_store %arg6[%c0_14, %c0_15], %16 {strides = array<i32>} : memref<2x32xf32, #tpu.memory_space<vmem>>, vector<2x32xf32>,
    } else {
    }
    return
  }
  func.func @transform_0(%arg0: i32, %arg1: i32, %arg2: i32) -> (i32, i32) {
    %c0_i32 = arith.constant 0 : i32
    return %arg0, %arg2 : i32, i32
  }
  func.func @transform_1(%arg0: i32, %arg1: i32, %arg2: i32) -> (i32, i32) {
    %c0_i32 = arith.constant 0 : i32
    return %arg2, %arg1 : i32, i32
  }
  func.func @transform_2(%arg0: i32, %arg1: i32, %arg2: i32) -> (i32, i32) {
    %c0_i32 = arith.constant 0 : i32
    %c0_i32_0 = arith.constant 0 : i32
    return %c0_i32, %arg1 : i32, i32
  }
  func.func @transform_3(%arg0: i32, %arg1: i32, %arg2: i32) -> (i32, i32) {
    %c0_i32 = arith.constant 0 : i32
    return %arg0, %arg1 : i32, i32
  }
}

</mosaic_0001>

<llo_original>
// kernel: bert_with_word_topics_forward.12
$region0: #{bert_with_word_topics_forward.12}
  #allocation0 [shape = 'u32[]', space=smem, size = 0x4, offset = 0x4, fixed_abs, tag = 'smem constant byte address 0x4 - core index']
  #allocation1 [shape = 'u32[144,128]{1,0:T(1,128)}', space=vmem, size = 0x12000, scoped, tag = 'internal scratch']
  #allocation2 [shape = 'f32[16,96]{1,0:T(8,128)}', space=vmem, size = 0x2000, scoped, tag = 'scratch operand']
  %s0 = inlined_call_operand.vmem [shape: bf16[16,32], index: 0, kind: input, shape index: {}]
  %s1 = inlined_call_operand.vmem [shape: bf16[32,96], index: 1, kind: input, shape index: {}]
  %s2 = inlined_call_operand.vmem [shape: f32[1,96], index: 2, kind: input, shape index: {}]
  %s3 = inlined_call_operand.vmem [shape: bf16[16,96], index: 3, kind: output, shape index: {}]
  %s4 = sld [smem:[#allocation0]]
  $region30: #{bert_with_word_topics_forward.12} parent=0
    _
  %s6 = ssub.s32 1, %s4
  %s7 = scalar_select 0, %s6, %s4
  // Predicated region
  $region2: #{bert_with_word_topics_forward.12} parent=0 // pred_check
    _
  $region3: #{bert_with_word_topics_forward.12} parent=0 // pred_check_branch
    %9 = sbr.rel (0) target = $region5
  $region4: #{bert_with_word_topics_forward.12} parent=0 // pred_region
    _
  $region5: #{bert_with_word_topics_forward.12} parent=0 // pred_fallthru
    _
  // Predicated region
  $region6: #{bert_with_word_topics_forward.12} parent=0 // pred_check
    _
  $region7: #{bert_with_word_topics_forward.12} parent=0 // pred_check_branch
    %11 = sbr.rel (0) target = $region9
  $region8: #{bert_with_word_topics_forward.12} parent=0 // pred_region
    _
  $region9: #{bert_with_word_topics_forward.12} parent=0 // pred_fallthru
    _
  // Predicated region
  $region10: #{bert_with_word_topics_forward.12} parent=0 // pred_check
    _
  $region11: #{bert_with_word_topics_forward.12} parent=0 // pred_check_branch
    %13 = sbr.rel (0) target = $region13
  $region12: #{bert_with_word_topics_forward.12} parent=0 // pred_region
    _
  $region13: #{bert_with_word_topics_forward.12} parent=0 // pred_fallthru
    _
  %p15 = scmp.eq.s32.totalorder 0, 0
  // Predicated region
  $region14: #{bert_with_word_topics_forward.12} parent=0 // pred_check
    %p16 = pneg %p15
  $region15: #{bert_with_word_topics_forward.12} parent=0 // pred_check_branch
    %18 = sbr.rel (%p16) target = $region17
  $region16: #{bert_with_word_topics_forward.12} parent=0 // pred_region
    %vm19 = vcmask 785408
    %20 = vst.msk [vmem:[#allocation2] sm:$0xff] %vm19, 0.0
    %21 = vst.msk [vmem:[#allocation2 + $0x8] sm:$0xff] %vm19, 0.0
  $region17: #{bert_with_word_topics_forward.12} parent=0 // pred_fallthru
    _
  %v22 = vld [vmem:[#allocation2] sm:$0xff]
  %v23 = vld [vmem:[#allocation2 + $0x8] sm:$0xff]
  %v24 = vld [vmem:[%s0] sm:$0xf]
  %v25 = vld [vmem:[%s0 + $0x4] sm:$0xf]
  %v26 = vld [vmem:[%s1] sm:$0xf]
  %v27 = vld [vmem:[%s1 + $0x4] sm:$0xf]
  %v28 = vld [vmem:[%s1 + $0x8] sm:$0xf]
  %v29 = vld [vmem:[%s1 + $0xc] sm:$0xf]
  %v32 = vunpack.c.l.b16 %v24
  %v33 = vunpack.c.l.b16 %v25
  %v34 = vpack.c.b16 %v33, %v32
  %v39 = vunpack.c.l.b16 %v26
  %v40 = vunpack.c.l.b16 %v27
  %v41 = vunpack.c.l.b16 %v28
  %v42 = vunpack.c.l.b16 %v29
  %v43 = vpack.c.b16 %v40, %v39
  %v44 = vpack.c.b16 %v42, %v41
  %vm47 = vcmask 261120
  %v49 = vsel %vm47, %v34, 0
  %51 = vmatprep.subr.bf16.mxu0 0
  %52 = vmatpush1.bf16.msra.mxu0 %v43
  %53 = vmatprep.subr.bf16.mxu0 0
  %54 = vmatpush1.bf16.msra.mxu0 %v44
  %55 = vmatprep.subr.bf16.mxu0 0
  %56 = vmatpush1.bf16.msra.mxu0 0
  %57 = vmatprep.subr.bf16.mxu0 0
  %58 = vmatpush1.bf16.msra.mxu0 0
  %59 = vmatprep.subr.bf16.mxu0 0
  %60 = vmatpush1.bf16.msra.mxu0 0
  %61 = vmatprep.subr.bf16.mxu0 0
  %62 = vmatpush1.bf16.msra.mxu0 0
  %63 = vmatprep.subr.bf16.mxu0 0
  %64 = vmatpush1.bf16.msra.mxu0 0
  %65 = vmatprep.subr.bf16.mxu0 0
  %66 = vmatpush1.bf16.msra.mxu0 0
  %67 = vmatprep.subr.bf16.mxu0 0
  %68 = vmatpush1.bf16.msra.mxu0 0
  %69 = vmatprep.subr.bf16.mxu0 0
  %70 = vmatpush1.bf16.msra.mxu0 0
  %71 = vmatprep.subr.bf16.mxu0 0
  %72 = vmatpush1.bf16.msra.mxu0 0
  %73 = vmatprep.subr.bf16.mxu0 0
  %74 = vmatpush1.bf16.msra.mxu0 0
  %75 = vmatprep.subr.bf16.mxu0 0
  %76 = vmatpush1.bf16.msra.mxu0 0
  %77 = vmatprep.subr.bf16.mxu0 0
  %78 = vmatpush1.bf16.msra.mxu0 0
  %79 = vmatprep.subr.bf16.mxu0 0
  %80 = vmatpush1.bf16.msra.mxu0 0
  %81 = vmatprep.subr.bf16.mxu0 0
  %82 = vmatpush1.bf16.msra.mxu0 0
  %83 = vmatprep.mubr.bf16.mxu0 0
  %84 = vmatmul.mubr.bf16.gmra.mrb[0].mxu0 %v49
  %v85 = vpop.f32.mrb[0].mxu0
  %v86 = vadd.f32 0.0, %v85
  %v87 = vpop.f32.mrb[0].mxu0
  %v88 = vpop.f32.mrb[0].mxu0
  %v89 = vadd.f32 0.0, %v88
  %v90 = vpop.f32.mrb[0].mxu0
  %91 = vdwg.mxu0
  %v92 = vadd.f32 %v22, %v86
  %v93 = vadd.f32 %v23, %v89
  %vm94 = vcmask 785408
  %95 = vst.msk [vmem:[#allocation2] sm:$0xff] %vm94, %v92
  %96 = vst.msk [vmem:[#allocation2 + $0x8] sm:$0xff] %vm94, %v93
  // Predicated region
  $region18: #{bert_with_word_topics_forward.12} parent=0 // pred_check
    %p97 = pneg %p15
  $region19: #{bert_with_word_topics_forward.12} parent=0 // pred_check_branch
    %99 = sbr.rel (%p97) target = $region21
  $region20: #{bert_with_word_topics_forward.12} parent=0 // pred_region
    %v100 = vld [vmem:[#allocation2] sm:$0xff]
    %v101 = vld [vmem:[#allocation2 + $0x8] sm:$0xff]
    %v102 = vld [vmem:[%s2] sm:$0x1]
    %v104 = vlaneseq
    %v105 = vshrl.u32 %v104, 7
    %v106 = vsub.s32 0, %v105
    %v107 = vrot.slane %v102, %v106
    %v109 = vadd.f32 %v100, %v107
    %v110 = vadd.f32 %v101, %v107
    %v111 = vpack.c.bf16 %v110, %v109
    %v113 = vunpack.c.l.b16 %v111
    %v114 = vunpack.c.h.b16 %v111
    %v115 = vpack.c.b16 %v113, %v113
    %v116 = vpack.c.b16 %v114, %v114
    %vm119 = vcmask 781312
    %120 = vst.msk [vmem:[%s3] sm:$0xf] %vm119, %v115
    %121 = vst.msk [vmem:[%s3 + $0x4] sm:$0xf] %vm119, %v116
  $region21: #{bert_with_word_topics_forward.12} parent=0 // pred_fallthru
    _
  // Predicated region
  $region22: #{bert_with_word_topics_forward.12} parent=0 // pred_check
    _
  $region23: #{bert_with_word_topics_forward.12} parent=0 // pred_check_branch
    %123 = sbr.rel (0) target = $region25
  $region24: #{bert_with_word_topics_forward.12} parent=0 // pred_region
    _
  $region25: #{bert_with_word_topics_forward.12} parent=0 // pred_fallthru
    _
  // Predicated region
  $region26: #{bert_with_word_topics_forward.12} parent=0 // pred_check
    _
  $region27: #{bert_with_word_topics_forward.12} parent=0 // pred_check_branch
    %125 = sbr.rel (0) target = $region29
  $region28: #{bert_with_word_topics_forward.12} parent=0 // pred_region
    _
  $region29: #{bert_with_word_topics_forward.12} parent=0 // pred_fallthru
    _

// kernel: bert_with_word_topics_forward.11
$region0: #{bert_with_word_topics_forward.11}
  #allocation0 [shape = 'u32[]', space=smem, size = 0x4, offset = 0x4, fixed_abs, tag = 'smem constant byte address 0x4 - core index']
  #allocation1 [shape = 'u32[144,128]{1,0:T(1,128)}', space=vmem, size = 0x12000, scoped, tag = 'internal scratch']
  %s0 = inlined_call_operand.vmem [shape: f32[16,32], index: 0, kind: input, shape index: {}]
  %s1 = inlined_call_operand.vmem [shape: f32[1,32], index: 1, kind: input, shape index: {}]
  %s2 = inlined_call_operand.vmem [shape: f32[1,32], index: 2, kind: input, shape index: {}]
  %s3 = inlined_call_operand.vmem [shape: bf16[16,32], index: 3, kind: output, shape index: {}]
  %s4 = sld [smem:[#allocation0]]
  $region22: #{bert_with_word_topics_forward.11} parent=0
    _
  %s6 = ssub.s32 1, %s4
  %s7 = scalar_select 0, %s6, %s4
  // Predicated region
  $region2: #{bert_with_word_topics_forward.11} parent=0 // pred_check
    _
  $region3: #{bert_with_word_topics_forward.11} parent=0 // pred_check_branch
    %9 = sbr.rel (0) target = $region5
  $region4: #{bert_with_word_topics_forward.11} parent=0 // pred_region
    _
  $region5: #{bert_with_word_topics_forward.11} parent=0 // pred_fallthru
    _
  // Predicated region
  $region6: #{bert_with_word_topics_forward.11} parent=0 // pred_check
    _
  $region7: #{bert_with_word_topics_forward.11} parent=0 // pred_check_branch
    %11 = sbr.rel (0) target = $region9
  $region8: #{bert_with_word_topics_forward.11} parent=0 // pred_region
    _
  $region9: #{bert_with_word_topics_forward.11} parent=0 // pred_fallthru
    _
  // Predicated region
  $region10: #{bert_with_word_topics_forward.11} parent=0 // pred_check
    _
  $region11: #{bert_with_word_topics_forward.11} parent=0 // pred_check_branch
    %13 = sbr.rel (0) target = $region13
  $region12: #{bert_with_word_topics_forward.11} parent=0 // pred_region
    _
  $region13: #{bert_with_word_topics_forward.11} parent=0 // pred_fallthru
    _
  %v14 = vld [vmem:[%s0] sm:$0xff]
  %v15 = vld [vmem:[%s0 + $0x8] sm:$0xff]
  %vm16 = vcmask 261120
  %v17 = vsel %vm16, %v14, 0.0
  %18 = vadd.xlane.f32.xlu0 %v17
  %v19 = vpop.xlane.xlu0 %18
  %v20 = vsel %vm16, %v15, 0.0
  %21 = vadd.xlane.f32.xlu0 %v20
  %v22 = vpop.xlane.xlu0 %21
  %v23 = vrcp.pop 32.0
  %v24 = vmul.f32 %v19, %v23
  %v25 = vmul.f32 %v22, %v23
  %v26 = vsub.f32 %v14, %v24
  %v27 = vsub.f32 %v15, %v25
  %v28 = vmul.f32 %v26, %v26
  %v29 = vmul.f32 %v27, %v27
  %v30 = vsel %vm16, %v28, 0.0
  %31 = vadd.xlane.f32.xlu0 %v30
  %v32 = vpop.xlane.xlu0 %31
  %v33 = vsel %vm16, %v29, 0.0
  %34 = vadd.xlane.f32.xlu0 %v33
  %v35 = vpop.xlane.xlu0 %34
  %v36 = vmul.f32 %v32, %v23
  %v37 = vmul.f32 %v35, %v23
  %v38 = vadd.f32 %v36, 1e-12
  %v39 = vadd.f32 %v37, 1e-12
  %v40 = vrsqrt.pop %v38
  %v41 = vrsqrt.pop %v39
  %v42 = vmul.f32 %v26, %v40
  %v43 = vmul.f32 %v27, %v41
  %v44 = vld [vmem:[%s1] sm:$0x1]
  %v46 = vlaneseq
  %v47 = vshrl.u32 %v46, 7
  %v48 = vsub.s32 0, %v47
  %v49 = vrot.slane %v44, %v48
  %v51 = vmul.f32 %v42, %v49
  %v52 = vmul.f32 %v43, %v49
  %v53 = vld [vmem:[%s2] sm:$0x1]
  %v55 = vlaneseq
  %v56 = vshrl.u32 %v55, 7
  %v57 = vsub.s32 0, %v56
  %v58 = vrot.slane %v53, %v57
  %v60 = vadd.f32 %v51, %v58
  %v61 = vadd.f32 %v52, %v58
  %v62 = vpack.c.bf16 %v61, %v60
  %v64 = vunpack.c.l.b16 %v62
  %v65 = vunpack.c.h.b16 %v62
  %v66 = vpack.c.b16 %v64, %v64
  %v67 = vpack.c.b16 %v65, %v65
  %vm70 = vcmask 257024
  %71 = vst.msk [vmem:[%s3] sm:$0xf] %vm70, %v66
  %72 = vst.msk [vmem:[%s3 + $0x4] sm:$0xf] %vm70, %v67
  // Predicated region
  $region14: #{bert_with_word_topics_forward.11} parent=0 // pred_check
    _
  $region15: #{bert_with_word_topics_forward.11} parent=0 // pred_check_branch
    %74 = sbr.rel (0) target = $region17
  $region16: #{bert_with_word_topics_forward.11} parent=0 // pred_region
    _
  $region17: #{bert_with_word_topics_forward.11} parent=0 // pred_fallthru
    _
  // Predicated region
  $region18: #{bert_with_word_topics_forward.11} parent=0 // pred_check
    _
  $region19: #{bert_with_word_topics_forward.11} parent=0 // pred_check_branch
    %76 = sbr.rel (0) target = $region21
  $region20: #{bert_with_word_topics_forward.11} parent=0 // pred_region
    _
  $region21: #{bert_with_word_topics_forward.11} parent=0 // pred_fallthru
    _

// kernel: bert_with_word_topics_forward.13
$region0: #{bert_with_word_topics_forward.13}
  #allocation0 [shape = 'u32[]', space=smem, size = 0x4, offset = 0x4, fixed_abs, tag = 'smem constant byte address 0x4 - core index']
  #allocation1 [shape = 'u32[144,128]{1,0:T(1,128)}', space=vmem, size = 0x12000, scoped, tag = 'internal scratch']
  %s0 = inlined_call_operand.vmem [shape: bf16[2,8,96], index: 0, kind: input, shape index: {}]
  %s1 = inlined_call_operand.vmem [shape: f32[2,1,8], index: 1, kind: input, shape index: {}]
  %s2 = inlined_call_operand.vmem [shape: bf16[2,8,32], index: 2, kind: output, shape index: {}]
  %s3 = sld [smem:[#allocation0]]
  $region41: #{bert_with_word_topics_forward.13} parent=0
    _
  %s5 = ssub.s32 1, %s3
  %s6 = scalar_select 0, %s5, %s3
  loop: start=0, step=1, limit=4
  $region2: #{bert_with_word_topics_forward.13} parent=0 // loop_pre_header
    _
  $region3: #{bert_with_word_topics_forward.13} parent=0 // loop_header
    %s8 = sphi 0, %s12
    %p9 = scmp.ge.s32.totalorder %s8, 4
    %s15 = sphi 0, %s27
    %s16 = sphi 0, %s23
    %s17 = sphi 0, %s15
    %s18 = sphi 0, %s16
    %s19 = sphi 0, %s17
    %s20 = sphi 0, %s18
    %s30 = sphi 0, %s32
    %s33 = sphi 0, %s30
    %s34 = sphi 0, %s33
    %s50 = sphi 0, %s34
    %s56 = sphi 0, %s58
    %s59 = sphi 0, %s56
    %s60 = sphi 0, %s59
    %s76 = sphi 0, %s60
    %s84 = sphi 0, %s86
    %s87 = sphi 0, %s84
    %s88 = sphi 0, %s87
    %s104 = sphi 0, %s88
  $region4: #{bert_with_word_topics_forward.13} parent=0 // loop_header_branch
    %11 = sbr.rel (%p9) target = $region8
  $region5: #{bert_with_word_topics_forward.13} parent=0 // loop_body
    %s13 = ssub.s32 %s8, 1
    %s14 = ssub.s32 %s8, 2
    %s21 = sadd.s32 1, %s16
    %p22 = scmp.ge.s32.totalorder %s21, 1
    %s23 = scalar_select %p22, 0, %s21
    %s24 = sadd.s32 1, %s15
    %s25 = scalar_select %p22, %s24, %s15
    %p26 = scmp.ge.s32.totalorder %s25, 2
    %s27 = scalar_select %p26, 0, %s25
    %s28 = ssub.s32 %s15, %s27
    %p29 = scmp.eq.s32.totalorder %s28, 0
    %s31 = sadd.s32 %s30, 1
    %s32 = scalar_select %p29, %s30, %s31
    %p35 = pneg %p29
    %p36 = scmp.eq.s32.totalorder %s8, 1
    %p37 = por %p35, %p36
    %p38 = scmp.ne.s32.totalorder %s30, %s33
    %p39 = scmp.eq.s32.totalorder %s8, 0
    %p40 = por %p38, %p39
    %p41 = scmp.ne.s32.totalorder %s30, %s33
    %p42 = scmp.eq.s32.totalorder %s13, 1
    %p43 = por %p41, %p42
    %p44 = scmp.ne.s32.totalorder %s33, %s34
    %p45 = scmp.eq.s32.totalorder %s13, 0
    %p46 = por %p44, %p45
    %p47 = scmp.ne.s32.totalorder %s33, %s34
    %p48 = scmp.eq.s32.totalorder %s14, 1
    %p49 = por %p47, %p48
    %p51 = scmp.ne.s32.totalorder %s34, %s50
    %p52 = scmp.eq.s32.totalorder %s14, 0
    %p53 = por %p51, %p52
    %s54 = ssub.s32 %s15, %s27
    %p55 = scmp.eq.s32.totalorder %s54, 0
    %s57 = sadd.s32 %s56, 1
    %s58 = scalar_select %p55, %s56, %s57
    %p61 = pneg %p55
    %p62 = scmp.eq.s32.totalorder %s8, 1
    %p63 = por %p61, %p62
    %p64 = scmp.ne.s32.totalorder %s56, %s59
    %p65 = scmp.eq.s32.totalorder %s8, 0
    %p66 = por %p64, %p65
    %p67 = scmp.ne.s32.totalorder %s56, %s59
    %p68 = scmp.eq.s32.totalorder %s13, 1
    %p69 = por %p67, %p68
    %p70 = scmp.ne.s32.totalorder %s59, %s60
    %p71 = scmp.eq.s32.totalorder %s13, 0
    %p72 = por %p70, %p71
    %p73 = scmp.ne.s32.totalorder %s59, %s60
    %p74 = scmp.eq.s32.totalorder %s14, 1
    %p75 = por %p73, %p74
    %p77 = scmp.ne.s32.totalorder %s60, %s76
    %p78 = scmp.eq.s32.totalorder %s14, 0
    %p79 = por %p77, %p78
    %s80 = ssub.s32 %s15, %s27
    %s81 = ssub.s32 %s16, %s23
    %s82 = sor.u32 %s80, %s81
    %p83 = scmp.eq.s32.totalorder %s82, 0
    %s85 = sadd.s32 %s84, 1
    %s86 = scalar_select %p83, %s84, %s85
    %p89 = pneg %p83
    %p90 = scmp.eq.s32.totalorder %s8, 1
    %p91 = por %p89, %p90
    %p92 = scmp.ne.s32.totalorder %s84, %s87
    %p93 = scmp.eq.s32.totalorder %s8, 0
    %p94 = por %p92, %p93
    %p95 = scmp.ne.s32.totalorder %s84, %s87
    %p96 = scmp.eq.s32.totalorder %s13, 1
    %p97 = por %p95, %p96
    %p98 = scmp.ne.s32.totalorder %s87, %s88
    %p99 = scmp.eq.s32.totalorder %s13, 0
    %p100 = por %p98, %p99
    %p101 = scmp.ne.s32.totalorder %s87, %s88
    %p102 = scmp.eq.s32.totalorder %s14, 1
    %p103 = por %p101, %p102
    %p105 = scmp.ne.s32.totalorder %s88, %s104
    %p106 = scmp.eq.s32.totalorder %s14, 0
    %p107 = por %p105, %p106
    %p108 = scmp.le.s32.totalorder 1, %s8
    %p109 = scmp.lt.s32.totalorder %s8, 3
    %p110 = pnand %p108, %p109
    %p111 = pneg %p110
    // Predicated region
    $region9: #{bert_with_word_topics_forward.13} parent=5 // pred_check
      _
    $region10: #{bert_with_word_topics_forward.13} parent=5 // pred_check_branch
      %113 = sbr.rel (%p110) target = $region12
    $region11: #{bert_with_word_topics_forward.13} parent=5 // pred_region
      %s114 = ssub.s32 %s8, 1
    $region12: #{bert_with_word_topics_forward.13} parent=5 // pred_fallthru
      _
    %p115 = scmp.lt.s32.totalorder %s8, 2
    // Predicated region
    $region13: #{bert_with_word_topics_forward.13} parent=5 // pred_check
      %p116 = pneg %p115
    $region14: #{bert_with_word_topics_forward.13} parent=5 // pred_check_branch
      %118 = sbr.rel (%p116) target = $region16
    $region15: #{bert_with_word_topics_forward.13} parent=5 // pred_region
      // Predicated region
      $region17: #{bert_with_word_topics_forward.13} parent=15 // pred_check
        %p119 = pneg %p40
      $region18: #{bert_with_word_topics_forward.13} parent=15 // pred_check_branch
        %121 = sbr.rel (%p119) target = $region20
      $region19: #{bert_with_word_topics_forward.13} parent=15 // pred_region
        %p122 = scmp.lt.s32.totalorder %s15, 1
        %s123 = scalar_select %p122, %s15, 1
        %s124 = smul.addr %s123, 4
        %s125 = scalar_lea.vmem %s0, %s124
      $region20: #{bert_with_word_topics_forward.13} parent=15 // pred_fallthru
        _
      // Predicated region
      $region21: #{bert_with_word_topics_forward.13} parent=15 // pred_check
        %p126 = pneg %p66
      $region22: #{bert_with_word_topics_forward.13} parent=15 // pred_check_branch
        %128 = sbr.rel (%p126) target = $region24
      $region23: #{bert_with_word_topics_forward.13} parent=15 // pred_region
        %p129 = scmp.lt.s32.totalorder %s15, 1
        %s130 = scalar_select %p129, %s15, 1
        %s131 = scalar_lea.vmem %s1, %s130
      $region24: #{bert_with_word_topics_forward.13} parent=15 // pred_fallthru
        _
    $region16: #{bert_with_word_topics_forward.13} parent=5 // pred_fallthru
      _
    %p132 = scmp.le.s32.totalorder 1, %s8
    %p133 = scmp.lt.s32.totalorder %s8, 3
    %p134 = pnand %p132, %p133
    %p135 = pneg %p134
    // Predicated region
    $region25: #{bert_with_word_topics_forward.13} parent=5 // pred_check
      _
    $region26: #{bert_with_word_topics_forward.13} parent=5 // pred_check_branch
      %137 = sbr.rel (%p134) target = $region28
    $region27: #{bert_with_word_topics_forward.13} parent=5 // pred_region
      %s138 = ssub.s32 %s8, 1
      %p139 = scmp.lt.s32.totalorder %s17, 1
      %s140 = scalar_select %p139, %s17, 1
      %s141 = smul.addr %s140, 4
      %s142 = scalar_lea.vmem %s0, %s141
      %p143 = pneg %p46
      %p144 = pneg %p43
      %p145 = scmp.lt.s32.totalorder %s17, 1
      %s146 = scalar_select %p145, %s17, 1
      %s147 = scalar_lea.vmem %s1, %s146
      %p148 = pneg %p72
      %p149 = pneg %p69
      %p150 = pneg %p100
      %p151 = pneg %p97
      %p152 = scmp.lt.s32.totalorder %s17, 1
      %s153 = scalar_select %p152, %s17, 1
      %p154 = scmp.lt.s32.totalorder %s18, 0
      %s155 = scalar_select %p154, %s18, 0
      %s156 = sadd.s32 %s155, %s153
      %s157 = smul.addr %s156, 4
      %s158 = scalar_lea.vmem %s2, %s157
      %p159 = scmp.lt.s32.totalorder %s17, 1
      %s160 = scalar_select %p159, %s17, 1
      %s161 = smul.addr %s160, 4
      %s162 = scalar_lea.vmem %s0, %s161
      %p163 = scmp.lt.s32.totalorder %s17, 1
      %s164 = scalar_select %p163, %s17, 1
      %s165 = scalar_lea.vmem %s1, %s164
      %p166 = scmp.lt.s32.totalorder %s17, 1
      %s167 = scalar_select %p166, %s17, 1
      %p168 = scmp.lt.s32.totalorder %s18, 0
      %s169 = scalar_select %p168, %s18, 0
      %s170 = sadd.s32 %s169, %s167
      %s171 = smul.addr %s170, 4
      %s172 = scalar_lea.vmem %s2, %s171
      %s175 = smul.u32 %s18, 8
      %v176 = vld [vmem:[%s165] sm:$0x1]
      %s177 = sshra.s32 %s175, 3
      %s178 = sand.u32 %s175, 7
      %s179 = smul.addr %s177, 4
      %s180 = scalar_lea.vmem %s162, %s179
      %v181 = vld [vmem:[%s180] sm:$0xf]
      %v182 = vmul.bf16 %v181, 1048592000
      %v183 = vld [vmem:[%s162] sm:$0xf]
      %v185 = vlaneseq
      %v186 = vshrl.u32 %v185, 7
      %v187 = vsub.s32 0, %v186
      %v188 = vrot.slane %v176, %v187
      %v191 = vunpack.c.l.b16 %v183
      %v192 = vpack.c.b16 %v191, %v191
      %193 = vrot.lane.b32.xlu0 %v192, 96
      %v194 = vpop.permute.xlu0 %193
      %vm195 = vcmask 130048
      %v197 = vsel %vm195, %v182, 0
      %v200 = vsel %vm195, %v194, 0
      %202 = vmatprep.subr.bf16.mxu0 0
      %203 = vmatpush1.bf16.xpose.msra.mxu0 %v200
      %204 = vmatprep.subr.bf16.mxu0 0
      %205 = vmatpush1.bf16.xpose.msra.mxu0 0
      %206 = vmatprep.subr.bf16.mxu0 0
      %207 = vmatpush1.bf16.xpose.msra.mxu0 0
      %208 = vmatprep.subr.bf16.mxu0 0
      %209 = vmatpush1.bf16.xpose.msra.mxu0 0
      %210 = vmatprep.subr.bf16.mxu0 0
      %211 = vmatpush1.bf16.xpose.msra.mxu0 0
      %212 = vmatprep.subr.bf16.mxu0 0
      %213 = vmatpush1.bf16.xpose.msra.mxu0 0
      %214 = vmatprep.subr.bf16.mxu0 0
      %215 = vmatpush1.bf16.xpose.msra.mxu0 0
      %216 = vmatprep.subr.bf16.mxu0 0
      %217 = vmatpush1.bf16.xpose.msra.mxu0 0
      %218 = vmatprep.subr.bf16.mxu0 0
      %219 = vmatpush1.bf16.xpose.msra.mxu0 0
      %220 = vmatprep.subr.bf16.mxu0 0
      %221 = vmatpush1.bf16.xpose.msra.mxu0 0
      %222 = vmatprep.subr.bf16.mxu0 0
      %223 = vmatpush1.bf16.xpose.msra.mxu0 0
      %224 = vmatprep.subr.bf16.mxu0 0
      %225 = vmatpush1.bf16.xpose.msra.mxu0 0
      %226 = vmatprep.subr.bf16.mxu0 0
      %227 = vmatpush1.bf16.xpose.msra.mxu0 0
      %228 = vmatprep.subr.bf16.mxu0 0
      %229 = vmatpush1.bf16.xpose.msra.mxu0 0
      %230 = vmatprep.subr.bf16.mxu0 0
      %231 = vmatpush1.bf16.xpose.msra.mxu0 0
      %232 = vmatprep.subr.bf16.mxu0 0
      %233 = vmatpush1.bf16.xpose.msra.mxu0 0
      %234 = vmatprep.mubr.bf16.mxu0 0
      %235 = vmatmul.mubr.bf16.gmra.mrb[0].mxu0 %v197
      %v236 = vpop.f32.mrb[0].mxu0
      %v237 = vadd.f32 %v188, %v236
      %v238 = vpop.f32.mrb[0].mxu0
      %v239 = vpop.f32.mrb[0].mxu0
      %v240 = vpop.f32.mrb[0].mxu0
      %241 = vdwg.mxu0
      %vm242 = vcmask 64512
      %v243 = vsel %vm242, %v237, -inf
      %244 = vmax.xlane.f32.xlu0 %v243
      %v245 = vpop.xlane.xlu0 %244
      %v246 = vsub.f32 %v237, %v245
      %v247 = vmul.f32 %v246, 1.442695
      %v248 = vpow.pop %v247
      %v249 = vsel %vm242, %v248, 0.0
      %250 = vadd.xlane.f32.xlu0 %v249
      %v251 = vpop.xlane.xlu0 %250
      %v252 = vrcp.pop %v251
      %v253 = vmul.f32 %v248, %v252
      %v254 = vpack.c.bf16 %v253, %v253
      %255 = vrot.lane.b32.xlu0 %v192, 64
      %v256 = vpop.permute.xlu0 %255
      %v258 = vsel %vm242, %v254, 0
      %vm260 = vcmask 1043456
      %v262 = vsel %vm260, %v256, 0
      %264 = vmatprep.subr.bf16.mxu0 0
      %265 = vmatpush1.bf16.msra.mxu0 %v262
      %266 = vmatprep.subr.bf16.mxu0 0
      %267 = vmatpush1.bf16.msra.mxu0 0
      %268 = vmatprep.subr.bf16.mxu0 0
      %269 = vmatpush1.bf16.msra.mxu0 0
      %270 = vmatprep.subr.bf16.mxu0 0
      %271 = vmatpush1.bf16.msra.mxu0 0
      %272 = vmatprep.subr.bf16.mxu0 0
      %273 = vmatpush1.bf16.msra.mxu0 0
      %274 = vmatprep.subr.bf16.mxu0 0
      %275 = vmatpush1.bf16.msra.mxu0 0
      %276 = vmatprep.subr.bf16.mxu0 0
      %277 = vmatpush1.bf16.msra.mxu0 0
      %278 = vmatprep.subr.bf16.mxu0 0
      %279 = vmatpush1.bf16.msra.mxu0 0
      %280 = vmatprep.subr.bf16.mxu0 0
      %281 = vmatpush1.bf16.msra.mxu0 0
      %282 = vmatprep.subr.bf16.mxu0 0
      %283 = vmatpush1.bf16.msra.mxu0 0
      %284 = vmatprep.subr.bf16.mxu0 0
      %285 = vmatpush1.bf16.msra.mxu0 0
      %286 = vmatprep.subr.bf16.mxu0 0
      %287 = vmatpush1.bf16.msra.mxu0 0
      %288 = vmatprep.subr.bf16.mxu0 0
      %289 = vmatpush1.bf16.msra.mxu0 0
      %290 = vmatprep.subr.bf16.mxu0 0
      %291 = vmatpush1.bf16.msra.mxu0 0
      %292 = vmatprep.subr.bf16.mxu0 0
      %293 = vmatpush1.bf16.msra.mxu0 0
      %294 = vmatprep.subr.bf16.mxu0 0
      %295 = vmatpush1.bf16.msra.mxu0 0
      %296 = vmatprep.mubr.bf16.mxu0 0
      %297 = vmatmul.mubr.bf16.gmra.mrb[0].mxu0 %v258
      %v298 = vpop.f32.mrb[0].mxu0
      %v299 = vadd.f32 0.0, %v298
      %v300 = vpop.f32.mrb[0].mxu0
      %v301 = vpop.f32.mrb[0].mxu0
      %v302 = vpop.f32.mrb[0].mxu0
      %303 = vdwg.mxu0
      %v305 = vunpack.c.l.b16 %v182
      %v306 = vpack.c.b16 %v305, %v305
      %307 = vrot.lane.b32.xlu0 %v306, 112
      %v308 = vpop.permute.xlu0 %307
      %309 = vrot.lane.b32.xlu0 %v192, 80
      %v310 = vpop.permute.xlu0 %309
      %v312 = vsel %vm195, %v308, 0
      %v315 = vsel %vm195, %v310, 0
      %317 = vmatprep.subr.bf16.mxu0 0
      %318 = vmatpush1.bf16.xpose.msra.mxu0 %v315
      %319 = vmatprep.subr.bf16.mxu0 0
      %320 = vmatpush1.bf16.xpose.msra.mxu0 0
      %321 = vmatprep.subr.bf16.mxu0 0
      %322 = vmatpush1.bf16.xpose.msra.mxu0 0
      %323 = vmatprep.subr.bf16.mxu0 0
      %324 = vmatpush1.bf16.xpose.msra.mxu0 0
      %325 = vmatprep.subr.bf16.mxu0 0
      %326 = vmatpush1.bf16.xpose.msra.mxu0 0
      %327 = vmatprep.subr.bf16.mxu0 0
      %328 = vmatpush1.bf16.xpose.msra.mxu0 0
      %329 = vmatprep.subr.bf16.mxu0 0
      %330 = vmatpush1.bf16.xpose.msra.mxu0 0
      %331 = vmatprep.subr.bf16.mxu0 0
      %332 = vmatpush1.bf16.xpose.msra.mxu0 0
      %333 = vmatprep.subr.bf16.mxu0 0
      %334 = vmatpush1.bf16.xpose.msra.mxu0 0
      %335 = vmatprep.subr.bf16.mxu0 0
      %336 = vmatpush1.bf16.xpose.msra.mxu0 0
      %337 = vmatprep.subr.bf16.mxu0 0
      %338 = vmatpush1.bf16.xpose.msra.mxu0 0
      %339 = vmatprep.subr.bf16.mxu0 0
      %340 = vmatpush1.bf16.xpose.msra.mxu0 0
      %341 = vmatprep.subr.bf16.mxu0 0
      %342 = vmatpush1.bf16.xpose.msra.mxu0 0
      %343 = vmatprep.subr.bf16.mxu0 0
      %344 = vmatpush1.bf16.xpose.msra.mxu0 0
      %345 = vmatprep.subr.bf16.mxu0 0
      %346 = vmatpush1.bf16.xpose.msra.mxu0 0
      %347 = vmatprep.subr.bf16.mxu0 0
      %348 = vmatpush1.bf16.xpose.msra.mxu0 0
      %349 = vmatprep.mubr.bf16.mxu0 0
      %350 = vmatmul.mubr.bf16.gmra.mrb[0].mxu0 %v312
      %v351 = vpop.f32.mrb[0].mxu0
      %v352 = vadd.f32 %v188, %v351
      %v353 = vpop.f32.mrb[0].mxu0
      %v354 = vpop.f32.mrb[0].mxu0
      %v355 = vpop.f32.mrb[0].mxu0
      %356 = vdwg.mxu0
      %v357 = vsel %vm242, %v352, -inf
      %358 = vmax.xlane.f32.xlu0 %v357
      %v359 = vpop.xlane.xlu0 %358
      %v360 = vsub.f32 %v352, %v359
      %v361 = vmul.f32 %v360, 1.442695
      %v362 = vpow.pop %v361
      %v363 = vsel %vm242, %v362, 0.0
      %364 = vadd.xlane.f32.xlu0 %v363
      %v365 = vpop.xlane.xlu0 %364
      %v366 = vrcp.pop %v365
      %v367 = vmul.f32 %v362, %v366
      %v368 = vpack.c.bf16 %v367, %v367
      %369 = vrot.lane.b32.xlu0 %v192, 48
      %v370 = vpop.permute.xlu0 %369
      %v372 = vsel %vm242, %v368, 0
      %v375 = vsel %vm260, %v370, 0
      %377 = vmatprep.subr.bf16.mxu0 0
      %378 = vmatpush1.bf16.msra.mxu0 %v375
      %379 = vmatprep.subr.bf16.mxu0 0
      %380 = vmatpush1.bf16.msra.mxu0 0
      %381 = vmatprep.subr.bf16.mxu0 0
      %382 = vmatpush1.bf16.msra.mxu0 0
      %383 = vmatprep.subr.bf16.mxu0 0
      %384 = vmatpush1.bf16.msra.mxu0 0
      %385 = vmatprep.subr.bf16.mxu0 0
      %386 = vmatpush1.bf16.msra.mxu0 0
      %387 = vmatprep.subr.bf16.mxu0 0
      %388 = vmatpush1.bf16.msra.mxu0 0
      %389 = vmatprep.subr.bf16.mxu0 0
      %390 = vmatpush1.bf16.msra.mxu0 0
      %391 = vmatprep.subr.bf16.mxu0 0
      %392 = vmatpush1.bf16.msra.mxu0 0
      %393 = vmatprep.subr.bf16.mxu0 0
      %394 = vmatpush1.bf16.msra.mxu0 0
      %395 = vmatprep.subr.bf16.mxu0 0
      %396 = vmatpush1.bf16.msra.mxu0 0
      %397 = vmatprep.subr.bf16.mxu0 0
      %398 = vmatpush1.bf16.msra.mxu0 0
      %399 = vmatprep.subr.bf16.mxu0 0
      %400 = vmatpush1.bf16.msra.mxu0 0
      %401 = vmatprep.subr.bf16.mxu0 0
      %402 = vmatpush1.bf16.msra.mxu0 0
      %403 = vmatprep.subr.bf16.mxu0 0
      %404 = vmatpush1.bf16.msra.mxu0 0
      %405 = vmatprep.subr.bf16.mxu0 0
      %406 = vmatpush1.bf16.msra.mxu0 0
      %407 = vmatprep.subr.bf16.mxu0 0
      %408 = vmatpush1.bf16.msra.mxu0 0
      %409 = vmatprep.mubr.bf16.mxu0 0
      %410 = vmatmul.mubr.bf16.gmra.mrb[0].mxu0 %v372
      %v411 = vpop.f32.mrb[0].mxu0
      %v412 = vadd.f32 0.0, %v411
      %v413 = vpop.f32.mrb[0].mxu0
      %v414 = vpop.f32.mrb[0].mxu0
      %v415 = vpop.f32.mrb[0].mxu0
      %416 = vdwg.mxu0
      %418 = vrot.lane.b32.xlu0 %v412, 16
      %v419 = vpop.permute.xlu0 %418
      %v421 = vsel %vm195, %v299, %v419
      %v422 = vpack.c.bf16 %v421, %v421
      %vm423 = vcmask 257024
      %424 = vst.msk [vmem:[%s172] sm:$0xf] %vm423, %v422
      %p425 = scmp.lt.s32.totalorder %s17, 1
      %s426 = scalar_select %p425, %s17, 1
      %p427 = scmp.lt.s32.totalorder %s18, 0
      %s428 = scalar_select %p427, %s18, 0
      %s429 = sadd.s32 %s428, %s426
      %s430 = smul.addr %s429, 4
      %s431 = scalar_lea.vmem %s2, %s430
      // Predicated region
      $region29: #{bert_with_word_topics_forward.13} parent=27 // pred_check
        %p432 = pneg %p97
      $region30: #{bert_with_word_topics_forward.13} parent=27 // pred_check_branch
        %434 = sbr.rel (%p432) target = $region32
      $region31: #{bert_with_word_topics_forward.13} parent=27 // pred_region
        _
      $region32: #{bert_with_word_topics_forward.13} parent=27 // pred_fallthru
        _
    $region28: #{bert_with_word_topics_forward.13} parent=5 // pred_fallthru
      _
    %p435 = scmp.le.s32.totalorder 2, %s8
    // Predicated region
    $region33: #{bert_with_word_topics_forward.13} parent=5 // pred_check
      %p436 = pneg %p435
    $region34: #{bert_with_word_topics_forward.13} parent=5 // pred_check_branch
      %438 = sbr.rel (%p436) target = $region36
    $region35: #{bert_with_word_topics_forward.13} parent=5 // pred_region
      %s439 = ssub.s32 %s8, 2
      // Predicated region
      $region37: #{bert_with_word_topics_forward.13} parent=35 // pred_check
        %p440 = pneg %p103
      $region38: #{bert_with_word_topics_forward.13} parent=35 // pred_check_branch
        %442 = sbr.rel (%p440) target = $region40
      $region39: #{bert_with_word_topics_forward.13} parent=35 // pred_region
        %p443 = scmp.lt.s32.totalorder %s19, 1
        %s444 = scalar_select %p443, %s19, 1
        %p445 = scmp.lt.s32.totalorder %s20, 0
        %s446 = scalar_select %p445, %s20, 0
        %s447 = sadd.s32 %s446, %s444
        %s448 = smul.addr %s447, 4
        %s449 = scalar_lea.vmem %s2, %s448
      $region40: #{bert_with_word_topics_forward.13} parent=35 // pred_fallthru
        _
    $region36: #{bert_with_word_topics_forward.13} parent=5 // pred_fallthru
      _
  $region6: #{bert_with_word_topics_forward.13} parent=0 // loop_footer
    %s12 = sadd.s32 1, %s8
  $region7: #{bert_with_word_topics_forward.13} parent=0 // loop_footer_branch
    %7 = sbr.rel target = $region3
  $region8: #{bert_with_word_topics_forward.13} parent=0 // loop_exit
    _

// kernel: bert_with_word_topics_forward.14
$region0: #{bert_with_word_topics_forward.14}
  #allocation0 [shape = 'u32[]', space=smem, size = 0x4, offset = 0x4, fixed_abs, tag = 'smem constant byte address 0x4 - core index']
  #allocation1 [shape = 'u32[144,128]{1,0:T(1,128)}', space=vmem, size = 0x12000, scoped, tag = 'internal scratch']
  %s0 = inlined_call_operand.vmem [shape: bf16[16,32], index: 0, kind: input, shape index: {}]
  %s1 = inlined_call_operand.vmem [shape: bf16[16,32], index: 1, kind: input, shape index: {}]
  %s2 = inlined_call_operand.vmem [shape: bf16[32,32], index: 2, kind: input, shape index: {}]
  %s3 = inlined_call_operand.vmem [shape: f32[1,32], index: 3, kind: input, shape index: {}]
  %s4 = inlined_call_operand.vmem [shape: f32[1,32], index: 4, kind: input, shape index: {}]
  %s5 = inlined_call_operand.vmem [shape: f32[1,32], index: 5, kind: input, shape index: {}]
  %s6 = inlined_call_operand.vmem [shape: bf16[16,32], index: 6, kind: output, shape index: {}]
  %s7 = sld [smem:[#allocation0]]
  $region34: #{bert_with_word_topics_forward.14} parent=0
    _
  %s9 = ssub.s32 1, %s7
  %s10 = scalar_select 0, %s9, %s7
  // Predicated region
  $region2: #{bert_with_word_topics_forward.14} parent=0 // pred_check
    _
  $region3: #{bert_with_word_topics_forward.14} parent=0 // pred_check_branch
    %12 = sbr.rel (0) target = $region5
  $region4: #{bert_with_word_topics_forward.14} parent=0 // pred_region
    _
  $region5: #{bert_with_word_topics_forward.14} parent=0 // pred_fallthru
    _
  // Predicated region
  $region6: #{bert_with_word_topics_forward.14} parent=0 // pred_check
    _
  $region7: #{bert_with_word_topics_forward.14} parent=0 // pred_check_branch
    %14 = sbr.rel (0) target = $region9
  $region8: #{bert_with_word_topics_forward.14} parent=0 // pred_region
    _
  $region9: #{bert_with_word_topics_forward.14} parent=0 // pred_fallthru
    _
  // Predicated region
  $region10: #{bert_with_word_topics_forward.14} parent=0 // pred_check
    _
  $region11: #{bert_with_word_topics_forward.14} parent=0 // pred_check_branch
    %16 = sbr.rel (0) target = $region13
  $region12: #{bert_with_word_topics_forward.14} parent=0 // pred_region
    _
  $region13: #{bert_with_word_topics_forward.14} parent=0 // pred_fallthru
    _
  // Predicated region
  $region14: #{bert_with_word_topics_forward.14} parent=0 // pred_check
    _
  $region15: #{bert_with_word_topics_forward.14} parent=0 // pred_check_branch
    %18 = sbr.rel (0) target = $region17
  $region16: #{bert_with_word_topics_forward.14} parent=0 // pred_region
    _
  $region17: #{bert_with_word_topics_forward.14} parent=0 // pred_fallthru
    _
  // Predicated region
  $region18: #{bert_with_word_topics_forward.14} parent=0 // pred_check
    _
  $region19: #{bert_with_word_topics_forward.14} parent=0 // pred_check_branch
    %20 = sbr.rel (0) target = $region21
  $region20: #{bert_with_word_topics_forward.14} parent=0 // pred_region
    _
  $region21: #{bert_with_word_topics_forward.14} parent=0 // pred_fallthru
    _
  // Predicated region
  $region22: #{bert_with_word_topics_forward.14} parent=0 // pred_check
    _
  $region23: #{bert_with_word_topics_forward.14} parent=0 // pred_check_branch
    %22 = sbr.rel (0) target = $region25
  $region24: #{bert_with_word_topics_forward.14} parent=0 // pred_region
    _
  $region25: #{bert_with_word_topics_forward.14} parent=0 // pred_fallthru
    _
  %v24 = vld [vmem:[%s0] sm:$0xf]
  %v25 = vld [vmem:[%s0 + $0x4] sm:$0xf]
  %v26 = vld [vmem:[%s2] sm:$0xf]
  %v27 = vld [vmem:[%s2 + $0x4] sm:$0xf]
  %v28 = vld [vmem:[%s2 + $0x8] sm:$0xf]
  %v29 = vld [vmem:[%s2 + $0xc] sm:$0xf]
  %v30 = vld [vmem:[%s3] sm:$0x1]
  %v32 = vlaneseq
  %v33 = vshrl.u32 %v32, 7
  %v34 = vsub.s32 0, %v33
  %v35 = vrot.slane %v30, %v34
  %v39 = vunpack.c.l.b16 %v24
  %v40 = vunpack.c.l.b16 %v25
  %v41 = vpack.c.b16 %v40, %v39
  %v46 = vunpack.c.l.b16 %v26
  %v47 = vunpack.c.l.b16 %v27
  %v48 = vunpack.c.l.b16 %v28
  %v49 = vunpack.c.l.b16 %v29
  %v50 = vpack.c.b16 %v47, %v46
  %v51 = vpack.c.b16 %v49, %v48
  %vm54 = vcmask 261120
  %v56 = vsel %vm54, %v41, 0
  %58 = vmatprep.subr.bf16.mxu0 0
  %59 = vmatpush1.bf16.msra.mxu0 %v50
  %60 = vmatprep.subr.bf16.mxu0 0
  %61 = vmatpush1.bf16.msra.mxu0 %v51
  %62 = vmatprep.subr.bf16.mxu0 0
  %63 = vmatpush1.bf16.msra.mxu0 0
  %64 = vmatprep.subr.bf16.mxu0 0
  %65 = vmatpush1.bf16.msra.mxu0 0
  %66 = vmatprep.subr.bf16.mxu0 0
  %67 = vmatpush1.bf16.msra.mxu0 0
  %68 = vmatprep.subr.bf16.mxu0 0
  %69 = vmatpush1.bf16.msra.mxu0 0
  %70 = vmatprep.subr.bf16.mxu0 0
  %71 = vmatpush1.bf16.msra.mxu0 0
  %72 = vmatprep.subr.bf16.mxu0 0
  %73 = vmatpush1.bf16.msra.mxu0 0
  %74 = vmatprep.subr.bf16.mxu0 0
  %75 = vmatpush1.bf16.msra.mxu0 0
  %76 = vmatprep.subr.bf16.mxu0 0
  %77 = vmatpush1.bf16.msra.mxu0 0
  %78 = vmatprep.subr.bf16.mxu0 0
  %79 = vmatpush1.bf16.msra.mxu0 0
  %80 = vmatprep.subr.bf16.mxu0 0
  %81 = vmatpush1.bf16.msra.mxu0 0
  %82 = vmatprep.subr.bf16.mxu0 0
  %83 = vmatpush1.bf16.msra.mxu0 0
  %84 = vmatprep.subr.bf16.mxu0 0
  %85 = vmatpush1.bf16.msra.mxu0 0
  %86 = vmatprep.subr.bf16.mxu0 0
  %87 = vmatpush1.bf16.msra.mxu0 0
  %88 = vmatprep.subr.bf16.mxu0 0
  %89 = vmatpush1.bf16.msra.mxu0 0
  %90 = vmatprep.mubr.bf16.mxu0 0
  %91 = vmatmul.mubr.bf16.gmra.mrb[0].mxu0 %v56
  %v92 = vpop.f32.mrb[0].mxu0
  %v93 = vadd.f32 %v35, %v92
  %v94 = vpop.f32.mrb[0].mxu0
  %v95 = vpop.f32.mrb[0].mxu0
  %v96 = vadd.f32 %v35, %v95
  %v97 = vpop.f32.mrb[0].mxu0
  %98 = vdwg.mxu0
  %v99 = vld [vmem:[%s1] sm:$0xf]
  %v100 = vld [vmem:[%s1 + $0x4] sm:$0xf]
  %v101 = vunpack.c.l.bf16 %v99
  %v102 = vunpack.c.l.bf16 %v100
  %v103 = vadd.f32 %v93, %v101
  %v104 = vadd.f32 %v96, %v102
  %v105 = vsel %vm54, %v103, 0.0
  %106 = vadd.xlane.f32.xlu0 %v105
  %v107 = vpop.xlane.xlu0 %106
  %v108 = vsel %vm54, %v104, 0.0
  %109 = vadd.xlane.f32.xlu0 %v108
  %v110 = vpop.xlane.xlu0 %109
  %v111 = vrcp.pop 32.0
  %v112 = vmul.f32 %v107, %v111
  %v113 = vmul.f32 %v110, %v111
  %v114 = vsub.f32 %v103, %v112
  %v115 = vsub.f32 %v104, %v113
  %v116 = vmul.f32 %v114, %v114
  %v117 = vmul.f32 %v115, %v115
  %v118 = vsel %vm54, %v116, 0.0
  %119 = vadd.xlane.f32.xlu0 %v118
  %v120 = vpop.xlane.xlu0 %119
  %v121 = vsel %vm54, %v117, 0.0
  %122 = vadd.xlane.f32.xlu0 %v121
  %v123 = vpop.xlane.xlu0 %122
  %v124 = vmul.f32 %v120, %v111
  %v125 = vmul.f32 %v123, %v111
  %v126 = vadd.f32 %v124, 1e-12
  %v127 = vadd.f32 %v125, 1e-12
  %v128 = vrsqrt.pop %v126
  %v129 = vrsqrt.pop %v127
  %v130 = vmul.f32 %v114, %v128
  %v131 = vmul.f32 %v115, %v129
  %v132 = vld [vmem:[%s4] sm:$0x1]
  %v134 = vlaneseq
  %v135 = vshrl.u32 %v134, 7
  %v136 = vsub.s32 0, %v135
  %v137 = vrot.slane %v132, %v136
  %v139 = vmul.f32 %v130, %v137
  %v140 = vmul.f32 %v131, %v137
  %v141 = vld [vmem:[%s5] sm:$0x1]
  %v143 = vlaneseq
  %v144 = vshrl.u32 %v143, 7
  %v145 = vsub.s32 0, %v144
  %v146 = vrot.slane %v141, %v145
  %v148 = vadd.f32 %v139, %v146
  %v149 = vadd.f32 %v140, %v146
  %v150 = vpack.c.bf16 %v149, %v148
  %v152 = vunpack.c.l.b16 %v150
  %v153 = vunpack.c.h.b16 %v150
  %v154 = vpack.c.b16 %v152, %v152
  %v155 = vpack.c.b16 %v153, %v153
  %vm158 = vcmask 257024
  %159 = vst.msk [vmem:[%s6] sm:$0xf] %vm158, %v154
  %160 = vst.msk [vmem:[%s6 + $0x4] sm:$0xf] %vm158, %v155
  // Predicated region
  $region26: #{bert_with_word_topics_forward.14} parent=0 // pred_check
    _
  $region27: #{bert_with_word_topics_forward.14} parent=0 // pred_check_branch
    %162 = sbr.rel (0) target = $region29
  $region28: #{bert_with_word_topics_forward.14} parent=0 // pred_region
    _
  $region29: #{bert_with_word_topics_forward.14} parent=0 // pred_fallthru
    _
  // Predicated region
  $region30: #{bert_with_word_topics_forward.14} parent=0 // pred_check
    _
  $region31: #{bert_with_word_topics_forward.14} parent=0 // pred_check_branch
    %164 = sbr.rel (0) target = $region33
  $region32: #{bert_with_word_topics_forward.14} parent=0 // pred_region
    _
  $region33: #{bert_with_word_topics_forward.14} parent=0 // pred_fallthru
    _

// kernel: bert_with_word_topics_forward.15
$region0: #{bert_with_word_topics_forward.15}
  #allocation0 [shape = 'u32[]', space=smem, size = 0x4, offset = 0x4, fixed_abs, tag = 'smem constant byte address 0x4 - core index']
  #allocation1 [shape = 'u32[144,128]{1,0:T(1,128)}', space=vmem, size = 0x12000, scoped, tag = 'internal scratch']
  %s0 = inlined_call_operand.vmem [shape: bf16[16,32], index: 0, kind: input, shape index: {}]
  %s1 = inlined_call_operand.vmem [shape: bf16[32,64], index: 1, kind: input, shape index: {}]
  %s2 = inlined_call_operand.vmem [shape: f32[1,64], index: 2, kind: input, shape index: {}]
  %s3 = inlined_call_operand.vmem [shape: bf16[64,32], index: 3, kind: input, shape index: {}]
  %s4 = inlined_call_operand.vmem [shape: f32[1,32], index: 4, kind: input, shape index: {}]
  %s5 = inlined_call_operand.vmem [shape: f32[1,32], index: 5, kind: input, shape index: {}]
  %s6 = inlined_call_operand.vmem [shape: f32[1,32], index: 6, kind: input, shape index: {}]
  %s7 = inlined_call_operand.vmem [shape: bf16[16,32], index: 7, kind: output, shape index: {}]
  %s8 = sld [smem:[#allocation0]]
  $region38: #{bert_with_word_topics_forward.15} parent=0
    _
  %s10 = ssub.s32 1, %s8
  %s11 = scalar_select 0, %s10, %s8
  // Predicated region
  $region2: #{bert_with_word_topics_forward.15} parent=0 // pred_check
    _
  $region3: #{bert_with_word_topics_forward.15} parent=0 // pred_check_branch
    %13 = sbr.rel (0) target = $region5
  $region4: #{bert_with_word_topics_forward.15} parent=0 // pred_region
    _
  $region5: #{bert_with_word_topics_forward.15} parent=0 // pred_fallthru
    _
  // Predicated region
  $region6: #{bert_with_word_topics_forward.15} parent=0 // pred_check
    _
  $region7: #{bert_with_word_topics_forward.15} parent=0 // pred_check_branch
    %15 = sbr.rel (0) target = $region9
  $region8: #{bert_with_word_topics_forward.15} parent=0 // pred_region
    _
  $region9: #{bert_with_word_topics_forward.15} parent=0 // pred_fallthru
    _
  // Predicated region
  $region10: #{bert_with_word_topics_forward.15} parent=0 // pred_check
    _
  $region11: #{bert_with_word_topics_forward.15} parent=0 // pred_check_branch
    %17 = sbr.rel (0) target = $region13
  $region12: #{bert_with_word_topics_forward.15} parent=0 // pred_region
    _
  $region13: #{bert_with_word_topics_forward.15} parent=0 // pred_fallthru
    _
  // Predicated region
  $region14: #{bert_with_word_topics_forward.15} parent=0 // pred_check
    _
  $region15: #{bert_with_word_topics_forward.15} parent=0 // pred_check_branch
    %19 = sbr.rel (0) target = $region17
  $region16: #{bert_with_word_topics_forward.15} parent=0 // pred_region
    _
  $region17: #{bert_with_word_topics_forward.15} parent=0 // pred_fallthru
    _
  // Predicated region
  $region18: #{bert_with_word_topics_forward.15} parent=0 // pred_check
    _
  $region19: #{bert_with_word_topics_forward.15} parent=0 // pred_check_branch
    %21 = sbr.rel (0) target = $region21
  $region20: #{bert_with_word_topics_forward.15} parent=0 // pred_region
    _
  $region21: #{bert_with_word_topics_forward.15} parent=0 // pred_fallthru
    _
  // Predicated region
  $region22: #{bert_with_word_topics_forward.15} parent=0 // pred_check
    _
  $region23: #{bert_with_word_topics_forward.15} parent=0 // pred_check_branch
    %23 = sbr.rel (0) target = $region25
  $region24: #{bert_with_word_topics_forward.15} parent=0 // pred_region
    _
  $region25: #{bert_with_word_topics_forward.15} parent=0 // pred_fallthru
    _
  // Predicated region
  $region26: #{bert_with_word_topics_forward.15} parent=0 // pred_check
    _
  $region27: #{bert_with_word_topics_forward.15} parent=0 // pred_check_branch
    %25 = sbr.rel (0) target = $region29
  $region28: #{bert_with_word_topics_forward.15} parent=0 // pred_region
    _
  $region29: #{bert_with_word_topics_forward.15} parent=0 // pred_fallthru
    _
  %v27 = vld [vmem:[%s0] sm:$0xf]
  %v28 = vld [vmem:[%s0 + $0x4] sm:$0xf]
  %v29 = vunpack.c.l.bf16 %v27
  %v30 = vunpack.c.l.bf16 %v28
  %v31 = vld [vmem:[%s4] sm:$0x1]
  %v33 = vlaneseq
  %v34 = vshrl.u32 %v33, 7
  %v35 = vsub.s32 0, %v34
  %v36 = vrot.slane %v31, %v35
  %v38 = vadd.f32 %v29, %v36
  %v39 = vadd.f32 %v30, %v36
  %v40 = vld [vmem:[%s1] sm:$0xf]
  %v41 = vld [vmem:[%s1 + $0x4] sm:$0xf]
  %v42 = vld [vmem:[%s1 + $0x8] sm:$0xf]
  %v43 = vld [vmem:[%s1 + $0xc] sm:$0xf]
  %v44 = vld [vmem:[%s2] sm:$0x1]
  %v46 = vlaneseq
  %v47 = vshrl.u32 %v46, 7
  %v48 = vsub.s32 0, %v47
  %v49 = vrot.slane %v44, %v48
  %v53 = vunpack.c.l.b16 %v27
  %v54 = vunpack.c.l.b16 %v28
  %v55 = vpack.c.b16 %v54, %v53
  %v60 = vunpack.c.l.b16 %v40
  %v61 = vunpack.c.l.b16 %v41
  %v62 = vunpack.c.l.b16 %v42
  %v63 = vunpack.c.l.b16 %v43
  %v64 = vpack.c.b16 %v61, %v60
  %v65 = vpack.c.b16 %v63, %v62
  %vm68 = vcmask 261120
  %v70 = vsel %vm68, %v55, 0
  %72 = vmatprep.subr.bf16.mxu0 0
  %73 = vmatpush1.bf16.msra.mxu0 %v64
  %74 = vmatprep.subr.bf16.mxu0 0
  %75 = vmatpush1.bf16.msra.mxu0 %v65
  %76 = vmatprep.subr.bf16.mxu0 0
  %77 = vmatpush1.bf16.msra.mxu0 0
  %78 = vmatprep.subr.bf16.mxu0 0
  %79 = vmatpush1.bf16.msra.mxu0 0
  %80 = vmatprep.subr.bf16.mxu0 0
  %81 = vmatpush1.bf16.msra.mxu0 0
  %82 = vmatprep.subr.bf16.mxu0 0
  %83 = vmatpush1.bf16.msra.mxu0 0
  %84 = vmatprep.subr.bf16.mxu0 0
  %85 = vmatpush1.bf16.msra.mxu0 0
  %86 = vmatprep.subr.bf16.mxu0 0
  %87 = vmatpush1.bf16.msra.mxu0 0
  %88 = vmatprep.subr.bf16.mxu0 0
  %89 = vmatpush1.bf16.msra.mxu0 0
  %90 = vmatprep.subr.bf16.mxu0 0
  %91 = vmatpush1.bf16.msra.mxu0 0
  %92 = vmatprep.subr.bf16.mxu0 0
  %93 = vmatpush1.bf16.msra.mxu0 0
  %94 = vmatprep.subr.bf16.mxu0 0
  %95 = vmatpush1.bf16.msra.mxu0 0
  %96 = vmatprep.subr.bf16.mxu0 0
  %97 = vmatpush1.bf16.msra.mxu0 0
  %98 = vmatprep.subr.bf16.mxu0 0
  %99 = vmatpush1.bf16.msra.mxu0 0
  %100 = vmatprep.subr.bf16.mxu0 0
  %101 = vmatpush1.bf16.msra.mxu0 0
  %102 = vmatprep.subr.bf16.mxu0 0
  %103 = vmatpush1.bf16.msra.mxu0 0
  %104 = vmatprep.mubr.bf16.mxu0 0
  %105 = vmatmul.mubr.bf16.gmra.mrb[0].mxu0 %v70
  %v106 = vpop.f32.mrb[0].mxu0
  %v107 = vadd.f32 %v49, %v106
  %v108 = vpop.f32.mrb[0].mxu0
  %v109 = vpop.f32.mrb[0].mxu0
  %v110 = vadd.f32 %v49, %v109
  %v111 = vpop.f32.mrb[0].mxu0
  %112 = vdwg.mxu0
  %v113 = vmul.f32 %v107, 0.5
  %v114 = vmul.f32 %v110, 0.5
  %v115 = vmul.f32 %v107, 0.044715
  %v116 = vmul.f32 %v110, 0.044715
  %v117 = vmul.f32 %v115, %v107
  %v118 = vmul.f32 %v116, %v110
  %v119 = vmul.f32 %v117, %v107
  %v120 = vmul.f32 %v118, %v110
  %v121 = vadd.f32 %v107, %v119
  %v122 = vadd.f32 %v110, %v120
  %v123 = vmul.f32 %v121, 0.7978846
  %v124 = vmul.f32 %v122, 0.7978846
  %v125 = vtanh.pop %v123
  %v126 = vtanh.pop %v124
  %v127 = vadd.f32 %v125, 1.0
  %v128 = vadd.f32 %v126, 1.0
  %v129 = vmul.f32 %v113, %v127
  %v130 = vmul.f32 %v114, %v128
  %v131 = vpack.c.bf16 %v130, %v129
  %v132 = vld [vmem:[%s3] sm:$0xf]
  %v133 = vld [vmem:[%s3 + $0x4] sm:$0xf]
  %v134 = vld [vmem:[%s3 + $0x8] sm:$0xf]
  %v135 = vld [vmem:[%s3 + $0xc] sm:$0xf]
  %v136 = vld [vmem:[%s3 + $0x10] sm:$0xf]
  %v137 = vld [vmem:[%s3 + $0x14] sm:$0xf]
  %v138 = vld [vmem:[%s3 + $0x18] sm:$0xf]
  %v139 = vld [vmem:[%s3 + $0x1c] sm:$0xf]
  %v148 = vunpack.c.l.b16 %v132
  %v149 = vunpack.c.l.b16 %v133
  %v150 = vunpack.c.l.b16 %v134
  %v151 = vunpack.c.l.b16 %v135
  %v152 = vunpack.c.l.b16 %v136
  %v153 = vunpack.c.l.b16 %v137
  %v154 = vunpack.c.l.b16 %v138
  %v155 = vunpack.c.l.b16 %v139
  %v156 = vpack.c.b16 %v149, %v148
  %v157 = vpack.c.b16 %v151, %v150
  %v158 = vpack.c.b16 %v153, %v152
  %v159 = vpack.c.b16 %v155, %v154
  %vm164 = vcmask 523264
  %v166 = vsel %vm164, %v131, 0
  %168 = vmatprep.subr.bf16.mxu0 0
  %169 = vmatpush1.bf16.msra.mxu0 %v156
  %170 = vmatprep.subr.bf16.mxu0 0
  %171 = vmatpush1.bf16.msra.mxu0 %v157
  %172 = vmatprep.subr.bf16.mxu0 0
  %173 = vmatpush1.bf16.msra.mxu0 %v158
  %174 = vmatprep.subr.bf16.mxu0 0
  %175 = vmatpush1.bf16.msra.mxu0 %v159
  %176 = vmatprep.subr.bf16.mxu0 0
  %177 = vmatpush1.bf16.msra.mxu0 0
  %178 = vmatprep.subr.bf16.mxu0 0
  %179 = vmatpush1.bf16.msra.mxu0 0
  %180 = vmatprep.subr.bf16.mxu0 0
  %181 = vmatpush1.bf16.msra.mxu0 0
  %182 = vmatprep.subr.bf16.mxu0 0
  %183 = vmatpush1.bf16.msra.mxu0 0
  %184 = vmatprep.subr.bf16.mxu0 0
  %185 = vmatpush1.bf16.msra.mxu0 0
  %186 = vmatprep.subr.bf16.mxu0 0
  %187 = vmatpush1.bf16.msra.mxu0 0
  %188 = vmatprep.subr.bf16.mxu0 0
  %189 = vmatpush1.bf16.msra.mxu0 0
  %190 = vmatprep.subr.bf16.mxu0 0
  %191 = vmatpush1.bf16.msra.mxu0 0
  %192 = vmatprep.subr.bf16.mxu0 0
  %193 = vmatpush1.bf16.msra.mxu0 0
  %194 = vmatprep.subr.bf16.mxu0 0
  %195 = vmatpush1.bf16.msra.mxu0 0
  %196 = vmatprep.subr.bf16.mxu0 0
  %197 = vmatpush1.bf16.msra.mxu0 0
  %198 = vmatprep.subr.bf16.mxu0 0
  %199 = vmatpush1.bf16.msra.mxu0 0
  %200 = vmatprep.mubr.bf16.mxu0 0
  %201 = vmatmul.mubr.bf16.gmra.mrb[0].mxu0 %v166
  %v202 = vpop.f32.mrb[0].mxu0
  %v203 = vadd.f32 0.0, %v202
  %v204 = vpop.f32.mrb[0].mxu0
  %v205 = vpop.f32.mrb[0].mxu0
  %v206 = vadd.f32 0.0, %v205
  %v207 = vpop.f32.mrb[0].mxu0
  %208 = vdwg.mxu0
  %v209 = vadd.f32 %v38, %v203
  %v210 = vadd.f32 %v39, %v206
  %v211 = vsel %vm68, %v209, 0.0
  %212 = vadd.xlane.f32.xlu0 %v211
  %v213 = vpop.xlane.xlu0 %212
  %v214 = vsel %vm68, %v210, 0.0
  %215 = vadd.xlane.f32.xlu0 %v214
  %v216 = vpop.xlane.xlu0 %215
  %v217 = vrcp.pop 32.0
  %v218 = vmul.f32 %v213, %v217
  %v219 = vmul.f32 %v216, %v217
  %v220 = vsub.f32 %v209, %v218
  %v221 = vsub.f32 %v210, %v219
  %v222 = vmul.f32 %v220, %v220
  %v223 = vmul.f32 %v221, %v221
  %v224 = vsel %vm68, %v222, 0.0
  %225 = vadd.xlane.f32.xlu0 %v224
  %v226 = vpop.xlane.xlu0 %225
  %v227 = vsel %vm68, %v223, 0.0
  %228 = vadd.xlane.f32.xlu0 %v227
  %v229 = vpop.xlane.xlu0 %228
  %v230 = vmul.f32 %v226, %v217
  %v231 = vmul.f32 %v229, %v217
  %v232 = vadd.f32 %v230, 1e-12
  %v233 = vadd.f32 %v231, 1e-12
  %v234 = vrsqrt.pop %v232
  %v235 = vrsqrt.pop %v233
  %v236 = vmul.f32 %v220, %v234
  %v237 = vmul.f32 %v221, %v235
  %v238 = vld [vmem:[%s5] sm:$0x1]
  %v240 = vlaneseq
  %v241 = vshrl.u32 %v240, 7
  %v242 = vsub.s32 0, %v241
  %v243 = vrot.slane %v238, %v242
  %v245 = vmul.f32 %v236, %v243
  %v246 = vmul.f32 %v237, %v243
  %v247 = vld [vmem:[%s6] sm:$0x1]
  %v249 = vlaneseq
  %v250 = vshrl.u32 %v249, 7
  %v251 = vsub.s32 0, %v250
  %v252 = vrot.slane %v247, %v251
  %v254 = vadd.f32 %v245, %v252
  %v255 = vadd.f32 %v246, %v252
  %v256 = vpack.c.bf16 %v255, %v254
  %v258 = vunpack.c.l.b16 %v256
  %v259 = vunpack.c.h.b16 %v256
  %v260 = vpack.c.b16 %v258, %v258
  %v261 = vpack.c.b16 %v259, %v259
  %vm264 = vcmask 257024
  %265 = vst.msk [vmem:[%s7] sm:$0xf] %vm264, %v260
  %266 = vst.msk [vmem:[%s7 + $0x4] sm:$0xf] %vm264, %v261
  // Predicated region
  $region30: #{bert_with_word_topics_forward.15} parent=0 // pred_check
    _
  $region31: #{bert_with_word_topics_forward.15} parent=0 // pred_check_branch
    %268 = sbr.rel (0) target = $region33
  $region32: #{bert_with_word_topics_forward.15} parent=0 // pred_region
    _
  $region33: #{bert_with_word_topics_forward.15} parent=0 // pred_fallthru
    _
  // Predicated region
  $region34: #{bert_with_word_topics_forward.15} parent=0 // pred_check
    _
  $region35: #{bert_with_word_topics_forward.15} parent=0 // pred_check_branch
    %270 = sbr.rel (0) target = $region37
  $region36: #{bert_with_word_topics_forward.15} parent=0 // pred_region
    _
  $region37: #{bert_with_word_topics_forward.15} parent=0 // pred_fallthru
    _

// kernel: bert_with_word_topics_forward.20
$region0: #{bert_with_word_topics_forward.20}
  #allocation0 [shape = 'u32[]', space=smem, size = 0x4, offset = 0x4, fixed_abs, tag = 'smem constant byte address 0x4 - core index']
  #allocation1 [shape = 'u32[144,128]{1,0:T(1,128)}', space=vmem, size = 0x12000, scoped, tag = 'internal scratch']
  #allocation2 [shape = 'f32[2,32]{1,0:T(2,128)}', space=vmem, size = 0x400, scoped, tag = 'scratch operand']
  %s0 = inlined_call_operand.vmem [shape: bf16[2,32], index: 0, kind: input, shape index: {}]
  %s1 = inlined_call_operand.vmem [shape: bf16[32,32], index: 1, kind: input, shape index: {}]
  %s2 = inlined_call_operand.vmem [shape: f32[1,32], index: 2, kind: input, shape index: {}]
  %s3 = inlined_call_operand.vmem [shape: f32[2,32], index: 3, kind: output, shape index: {}]
  %s4 = sld [smem:[#allocation0]]
  $region30: #{bert_with_word_topics_forward.20} parent=0
    _
  %s6 = ssub.s32 1, %s4
  %s7 = scalar_select 0, %s6, %s4
  // Predicated region
  $region2: #{bert_with_word_topics_forward.20} parent=0 // pred_check
    _
  $region3: #{bert_with_word_topics_forward.20} parent=0 // pred_check_branch
    %9 = sbr.rel (0) target = $region5
  $region4: #{bert_with_word_topics_forward.20} parent=0 // pred_region
    _
  $region5: #{bert_with_word_topics_forward.20} parent=0 // pred_fallthru
    _
  // Predicated region
  $region6: #{bert_with_word_topics_forward.20} parent=0 // pred_check
    _
  $region7: #{bert_with_word_topics_forward.20} parent=0 // pred_check_branch
    %11 = sbr.rel (0) target = $region9
  $region8: #{bert_with_word_topics_forward.20} parent=0 // pred_region
    _
  $region9: #{bert_with_word_topics_forward.20} parent=0 // pred_fallthru
    _
  // Predicated region
  $region10: #{bert_with_word_topics_forward.20} parent=0 // pred_check
    _
  $region11: #{bert_with_word_topics_forward.20} parent=0 // pred_check_branch
    %13 = sbr.rel (0) target = $region13
  $region12: #{bert_with_word_topics_forward.20} parent=0 // pred_region
    _
  $region13: #{bert_with_word_topics_forward.20} parent=0 // pred_fallthru
    _
  %p15 = scmp.eq.s32.totalorder 0, 0
  // Predicated region
  $region14: #{bert_with_word_topics_forward.20} parent=0 // pred_check
    %p16 = pneg %p15
  $region15: #{bert_with_word_topics_forward.20} parent=0 // pred_check_branch
    %18 = sbr.rel (%p16) target = $region17
  $region16: #{bert_with_word_topics_forward.20} parent=0 // pred_region
    %vm19 = vcmask 254976
    %20 = vst.msk [vmem:[#allocation2] sm:$0x3] %vm19, 0.0
  $region17: #{bert_with_word_topics_forward.20} parent=0 // pred_fallthru
    _
  %v21 = vld [vmem:[#allocation2] sm:$0x3]
  %v22 = vld [vmem:[%s0] sm:$0x1]
  %v23 = vld [vmem:[%s1] sm:$0xf]
  %v24 = vld [vmem:[%s1 + $0x4] sm:$0xf]
  %v25 = vld [vmem:[%s1 + $0x8] sm:$0xf]
  %v26 = vld [vmem:[%s1 + $0xc] sm:$0xf]
  %v31 = vunpack.c.l.b16 %v23
  %v32 = vunpack.c.l.b16 %v24
  %v33 = vunpack.c.l.b16 %v25
  %v34 = vunpack.c.l.b16 %v26
  %v35 = vpack.c.b16 %v32, %v31
  %v36 = vpack.c.b16 %v34, %v33
  %vm39 = vcmask 261120
  %v41 = vsel %vm39, %v22, 0
  %43 = vmatprep.subr.bf16.mxu0 0
  %44 = vmatpush1.bf16.msra.mxu0 %v35
  %45 = vmatprep.subr.bf16.mxu0 0
  %46 = vmatpush1.bf16.msra.mxu0 %v36
  %47 = vmatprep.subr.bf16.mxu0 0
  %48 = vmatpush1.bf16.msra.mxu0 0
  %49 = vmatprep.subr.bf16.mxu0 0
  %50 = vmatpush1.bf16.msra.mxu0 0
  %51 = vmatprep.subr.bf16.mxu0 0
  %52 = vmatpush1.bf16.msra.mxu0 0
  %53 = vmatprep.subr.bf16.mxu0 0
  %54 = vmatpush1.bf16.msra.mxu0 0
  %55 = vmatprep.subr.bf16.mxu0 0
  %56 = vmatpush1.bf16.msra.mxu0 0
  %57 = vmatprep.subr.bf16.mxu0 0
  %58 = vmatpush1.bf16.msra.mxu0 0
  %59 = vmatprep.subr.bf16.mxu0 0
  %60 = vmatpush1.bf16.msra.mxu0 0
  %61 = vmatprep.subr.bf16.mxu0 0
  %62 = vmatpush1.bf16.msra.mxu0 0
  %63 = vmatprep.subr.bf16.mxu0 0
  %64 = vmatpush1.bf16.msra.mxu0 0
  %65 = vmatprep.subr.bf16.mxu0 0
  %66 = vmatpush1.bf16.msra.mxu0 0
  %67 = vmatprep.subr.bf16.mxu0 0
  %68 = vmatpush1.bf16.msra.mxu0 0
  %69 = vmatprep.subr.bf16.mxu0 0
  %70 = vmatpush1.bf16.msra.mxu0 0
  %71 = vmatprep.subr.bf16.mxu0 0
  %72 = vmatpush1.bf16.msra.mxu0 0
  %73 = vmatprep.subr.bf16.mxu0 0
  %74 = vmatpush1.bf16.msra.mxu0 0
  %75 = vmatprep.mubr.bf16.mxu0 0
  %76 = vmatmul.mubr.bf16.gmra.mrb[0].mxu0 %v41
  %v77 = vpop.f32.mrb[0].mxu0
  %v78 = vadd.f32 0.0, %v77
  %v79 = vpop.f32.mrb[0].mxu0
  %v80 = vpop.f32.mrb[0].mxu0
  %v81 = vpop.f32.mrb[0].mxu0
  %82 = vdwg.mxu0
  %v83 = vadd.f32 %v21, %v78
  %vm84 = vcmask 254976
  %85 = vst.msk [vmem:[#allocation2] sm:$0x3] %vm84, %v83
  // Predicated region
  $region18: #{bert_with_word_topics_forward.20} parent=0 // pred_check
    %p86 = pneg %p15
  $region19: #{bert_with_word_topics_forward.20} parent=0 // pred_check_branch
    %88 = sbr.rel (%p86) target = $region21
  $region20: #{bert_with_word_topics_forward.20} parent=0 // pred_region
    %v89 = vld [vmem:[#allocation2] sm:$0x3]
    %v90 = vld [vmem:[%s2] sm:$0x1]
    %v92 = vlaneseq
    %v93 = vshrl.u32 %v92, 7
    %v94 = vsub.s32 0, %v93
    %v95 = vrot.slane %v90, %v94
    %v97 = vadd.f32 %v89, %v95
    %v98 = vtanh.pop %v97
    %99 = vst.msk [vmem:[%s3] sm:$0x3] %vm84, %v98
  $region21: #{bert_with_word_topics_forward.20} parent=0 // pred_fallthru
    _
  // Predicated region
  $region22: #{bert_with_word_topics_forward.20} parent=0 // pred_check
    _
  $region23: #{bert_with_word_topics_forward.20} parent=0 // pred_check_branch
    %101 = sbr.rel (0) target = $region25
  $region24: #{bert_with_word_topics_forward.20} parent=0 // pred_region
    _
  $region25: #{bert_with_word_topics_forward.20} parent=0 // pred_fallthru
    _
  // Predicated region
  $region26: #{bert_with_word_topics_forward.20} parent=0 // pred_check
    _
  $region27: #{bert_with_word_topics_forward.20} parent=0 // pred_check_branch
    %103 = sbr.rel (0) target = $region29
  $region28: #{bert_with_word_topics_forward.20} parent=0 // pred_region
    _
  $region29: #{bert_with_word_topics_forward.20} parent=0 // pred_fallthru
    _

// kernel: bert_with_word_topics_forward.21
$region0: #{bert_with_word_topics_forward.21}
  #allocation0 [shape = 'u32[]', space=smem, size = 0x4, offset = 0x4, fixed_abs, tag = 'smem constant byte address 0x4 - core index']
  #allocation1 [shape = 'u32[144,128]{1,0:T(1,128)}', space=vmem, size = 0x12000, scoped, tag = 'internal scratch']
  %s0 = inlined_call_operand.vmem [shape: f32[2,32], index: 0, kind: input, shape index: {}]
  %s1 = inlined_call_operand.vmem [shape: f32[2,6,16], index: 1, kind: input, shape index: {}]
  %s2 = inlined_call_operand.vmem [shape: f32[48,48], index: 2, kind: input, shape index: {}]
  %s3 = inlined_call_operand.vmem [shape: f32[1,48], index: 3, kind: input, shape index: {}]
  %s4 = inlined_call_operand.vmem [shape: f32[48,3], index: 4, kind: input, shape index: {}]
  %s5 = inlined_call_operand.vmem [shape: f32[1,3], index: 5, kind: input, shape index: {}]
  %s6 = inlined_call_operand.hbm [shape: f32[2,3], index: 6, kind: output, shape index: {}]
  %s7 = sld [smem:[#allocation0]]
  $region34: #{bert_with_word_topics_forward.21} parent=0
    _
  %s9 = ssub.s32 1, %s7
  %s10 = scalar_select 0, %s9, %s7
  $region1: #{bert_with_word_topics_forward.21} parent=0
    #allocation2 [shape = 'u8[1024]{0}', space=vmem, size = 0x400, scoped, tag = 'output window, operand 0, single buffered']
    #allocation3 [shape = 's32[1]{0}', space=sflag, size = 0x4, scoped, tag = 'scoped memory for bert_with_word_topics_forward.21']
    %11 = vsyncpa [#allocation3], 0
    // Predicated region
    $region2: #{bert_with_word_topics_forward.21} parent=1 // pred_check
      _
    $region3: #{bert_with_word_topics_forward.21} parent=1 // pred_check_branch
      %13 = sbr.rel (0) target = $region5
    $region4: #{bert_with_word_topics_forward.21} parent=1 // pred_region
      _
    $region5: #{bert_with_word_topics_forward.21} parent=1 // pred_fallthru
      _
    // Predicated region
    $region6: #{bert_with_word_topics_forward.21} parent=1 // pred_check
      _
    $region7: #{bert_with_word_topics_forward.21} parent=1 // pred_check_branch
      %15 = sbr.rel (0) target = $region9
    $region8: #{bert_with_word_topics_forward.21} parent=1 // pred_region
      _
    $region9: #{bert_with_word_topics_forward.21} parent=1 // pred_fallthru
      _
    // Predicated region
    $region10: #{bert_with_word_topics_forward.21} parent=1 // pred_check
      _
    $region11: #{bert_with_word_topics_forward.21} parent=1 // pred_check_branch
      %17 = sbr.rel (0) target = $region13
    $region12: #{bert_with_word_topics_forward.21} parent=1 // pred_region
      _
    $region13: #{bert_with_word_topics_forward.21} parent=1 // pred_fallthru
      _
    // Predicated region
    $region14: #{bert_with_word_topics_forward.21} parent=1 // pred_check
      _
    $region15: #{bert_with_word_topics_forward.21} parent=1 // pred_check_branch
      %19 = sbr.rel (0) target = $region17
    $region16: #{bert_with_word_topics_forward.21} parent=1 // pred_region
      _
    $region17: #{bert_with_word_topics_forward.21} parent=1 // pred_fallthru
      _
    // Predicated region
    $region18: #{bert_with_word_topics_forward.21} parent=1 // pred_check
      _
    $region19: #{bert_with_word_topics_forward.21} parent=1 // pred_check_branch
      %21 = sbr.rel (0) target = $region21
    $region20: #{bert_with_word_topics_forward.21} parent=1 // pred_region
      _
    $region21: #{bert_with_word_topics_forward.21} parent=1 // pred_fallthru
      _
    // Predicated region
    $region22: #{bert_with_word_topics_forward.21} parent=1 // pred_check
      _
    $region23: #{bert_with_word_topics_forward.21} parent=1 // pred_check_branch
      %23 = sbr.rel (0) target = $region25
    $region24: #{bert_with_word_topics_forward.21} parent=1 // pred_region
      _
    $region25: #{bert_with_word_topics_forward.21} parent=1 // pred_fallthru
      _
    %v24 = vld [vmem:[%s1] sm:$0x3f]
    %v25 = vld [vmem:[%s1 + $0x8] sm:$0x3f]
    %vm26 = vcmask 128000
    %v27 = vsel %vm26, %v24, 0.0
    %v28 = vrot.slane %v27, 4
    %v29 = vadd.f32 %v27, %v28
    %v30 = vrot.slane %v29, 2
    %v31 = vadd.f32 %v29, %v30
    %v32 = vrot.slane %v31, 1
    %v33 = vadd.f32 %v31, %v32
    %v34 = vsel %vm26, %v25, 0.0
    %v35 = vrot.slane %v34, 4
    %v36 = vadd.f32 %v34, %v35
    %v37 = vrot.slane %v36, 2
    %v38 = vadd.f32 %v36, %v37
    %v39 = vrot.slane %v38, 1
    %v40 = vadd.f32 %v38, %v39
    %v41 = vrcp.pop 6.0
    %v42 = vmul.f32 %v33, %v41
    %v43 = vmul.f32 %v40, %v41
    %v44 = vld [vmem:[%s0] sm:$0x3]
    %v45 = vld [vmem:[%s2] sm:$0xff]
    %v46 = vld [vmem:[%s2 + $0x8] sm:$0xff]
    %v47 = vld [vmem:[%s2 + $0x10] sm:$0xff]
    %v48 = vld [vmem:[%s2 + $0x18] sm:$0xff]
    %v49 = vld [vmem:[%s2 + $0x20] sm:$0xff]
    %v50 = vld [vmem:[%s2 + $0x28] sm:$0xff]
    %vm53 = vcmask 1041409
    %v54 = vsel %vm53, %v43, %v42
    %vm55 = vcmask 130048
    %v56 = vsel %vm55, %v54, 0
    %58 = vmatprep.subr.mxu0 0.0
    %59 = vmatpush1.msra.mxu0 %v49
    %60 = vmatprep.subr.mxu0 0.0
    %61 = vmatpush1.msra.mxu0 %v50
    %62 = vmatprep.subr.mxu0 0.0
    %63 = vmatpush1.msra.mxu0 0.0
    %64 = vmatprep.subr.mxu0 0.0
    %65 = vmatpush1.msra.mxu0 0.0
    %66 = vmatprep.subr.mxu0 0.0
    %67 = vmatpush1.msra.mxu0 0.0
    %68 = vmatprep.subr.mxu0 0.0
    %69 = vmatpush1.msra.mxu0 0.0
    %70 = vmatprep.subr.mxu0 0.0
    %71 = vmatpush1.msra.mxu0 0.0
    %72 = vmatprep.subr.mxu0 0.0
    %73 = vmatpush1.msra.mxu0 0.0
    %74 = vmatprep.subr.mxu0 0.0
    %75 = vmatpush1.msra.mxu0 0.0
    %76 = vmatprep.subr.mxu0 0.0
    %77 = vmatpush1.msra.mxu0 0.0
    %78 = vmatprep.subr.mxu0 0.0
    %79 = vmatpush1.msra.mxu0 0.0
    %80 = vmatprep.subr.mxu0 0.0
    %81 = vmatpush1.msra.mxu0 0.0
    %82 = vmatprep.subr.mxu0 0.0
    %83 = vmatpush1.msra.mxu0 0.0
    %84 = vmatprep.subr.mxu0 0.0
    %85 = vmatpush1.msra.mxu0 0.0
    %86 = vmatprep.subr.mxu0 0.0
    %87 = vmatpush1.msra.mxu0 0.0
    %88 = vmatprep.subr.mxu0 0.0
    %89 = vmatpush1.msra.mxu0 0.0
    %90 = vmatprep.subr.mxu0 0.0
    %91 = vmatpush1.msra.mxu0 0.0
    %92 = vmatprep.subr.mxu0 0.0
    %93 = vmatpush1.msra.mxu0 0.0
    %94 = vmatprep.subr.mxu0 0.0
    %95 = vmatpush1.msra.mxu0 0.0
    %96 = vmatprep.subr.mxu0 0.0
    %97 = vmatpush1.msra.mxu0 0.0
    %98 = vmatprep.subr.mxu0 0.0
    %99 = vmatpush1.msra.mxu0 0.0
    %100 = vmatprep.subr.mxu0 0.0
    %101 = vmatpush1.msra.mxu0 0.0
    %102 = vmatprep.subr.mxu0 0.0
    %103 = vmatpush1.msra.mxu0 0.0
    %104 = vmatprep.subr.mxu0 0.0
    %105 = vmatpush1.msra.mxu0 0.0
    %106 = vmatprep.subr.mxu0 0.0
    %107 = vmatpush1.msra.mxu0 0.0
    %108 = vmatprep.subr.mxu0 0.0
    %109 = vmatpush1.msra.mxu0 0.0
    %110 = vmatprep.subr.mxu0 0.0
    %111 = vmatpush1.msra.mxu0 0.0
    %112 = vmatprep.subr.mxu0 0.0
    %113 = vmatpush1.msra.mxu0 0.0
    %114 = vmatprep.subr.mxu0 0.0
    %115 = vmatpush1.msra.mxu0 0.0
    %116 = vmatprep.subr.mxu0 0.0
    %117 = vmatpush1.msra.mxu0 0.0
    %118 = vmatprep.subr.mxu0 0.0
    %119 = vmatpush1.msra.mxu0 0.0
    %120 = vmatprep.subr.mxu0 0.0
    %121 = vmatpush1.msra.mxu0 0.0
    %122 = vmatprep.mubr.f32.mxu0 0.0
    %123 = vmatmul.mubr.f32.gmra.mrb[0].mxu0 %v56
    %v124 = vpop.f32.mrb[0].mxu0
    %v125 = vadd.f32 0.0, %v124
    %v126 = vpop.f32.mrb[0].mxu0
    %127 = vdwg.mxu0
    %vm128 = vcmask 261120
    %v130 = vsel %vm128, %v44, 0
    %132 = vmatprep.subr.mxu0 0.0
    %133 = vmatpush1.msra.mxu0 %v45
    %134 = vmatprep.subr.mxu0 0.0
    %135 = vmatpush1.msra.mxu0 %v46
    %136 = vmatprep.subr.mxu0 0.0
    %137 = vmatpush1.msra.mxu0 %v47
    %138 = vmatprep.subr.mxu0 0.0
    %139 = vmatpush1.msra.mxu0 %v48
    %140 = vmatprep.subr.mxu0 0.0
    %141 = vmatpush1.msra.mxu0 0.0
    %142 = vmatprep.subr.mxu0 0.0
    %143 = vmatpush1.msra.mxu0 0.0
    %144 = vmatprep.subr.mxu0 0.0
    %145 = vmatpush1.msra.mxu0 0.0
    %146 = vmatprep.subr.mxu0 0.0
    %147 = vmatpush1.msra.mxu0 0.0
    %148 = vmatprep.subr.mxu0 0.0
    %149 = vmatpush1.msra.mxu0 0.0
    %150 = vmatprep.subr.mxu0 0.0
    %151 = vmatpush1.msra.mxu0 0.0
    %152 = vmatprep.subr.mxu0 0.0
    %153 = vmatpush1.msra.mxu0 0.0
    %154 = vmatprep.subr.mxu0 0.0
    %155 = vmatpush1.msra.mxu0 0.0
    %156 = vmatprep.subr.mxu0 0.0
    %157 = vmatpush1.msra.mxu0 0.0
    %158 = vmatprep.subr.mxu0 0.0
    %159 = vmatpush1.msra.mxu0 0.0
    %160 = vmatprep.subr.mxu0 0.0
    %161 = vmatpush1.msra.mxu0 0.0
    %162 = vmatprep.subr.mxu0 0.0
    %163 = vmatpush1.msra.mxu0 0.0
    %164 = vmatprep.subr.mxu0 0.0
    %165 = vmatpush1.msra.mxu0 0.0
    %166 = vmatprep.subr.mxu0 0.0
    %167 = vmatpush1.msra.mxu0 0.0
    %168 = vmatprep.subr.mxu0 0.0
    %169 = vmatpush1.msra.mxu0 0.0
    %170 = vmatprep.subr.mxu0 0.0
    %171 = vmatpush1.msra.mxu0 0.0
    %172 = vmatprep.subr.mxu0 0.0
    %173 = vmatpush1.msra.mxu0 0.0
    %174 = vmatprep.subr.mxu0 0.0
    %175 = vmatpush1.msra.mxu0 0.0
    %176 = vmatprep.subr.mxu0 0.0
    %177 = vmatpush1.msra.mxu0 0.0
    %178 = vmatprep.subr.mxu0 0.0
    %179 = vmatpush1.msra.mxu0 0.0
    %180 = vmatprep.subr.mxu0 0.0
    %181 = vmatpush1.msra.mxu0 0.0
    %182 = vmatprep.subr.mxu0 0.0
    %183 = vmatpush1.msra.mxu0 0.0
    %184 = vmatprep.subr.mxu0 0.0
    %185 = vmatpush1.msra.mxu0 0.0
    %186 = vmatprep.subr.mxu0 0.0
    %187 = vmatpush1.msra.mxu0 0.0
    %188 = vmatprep.subr.mxu0 0.0
    %189 = vmatpush1.msra.mxu0 0.0
    %190 = vmatprep.subr.mxu0 0.0
    %191 = vmatpush1.msra.mxu0 0.0
    %192 = vmatprep.subr.mxu0 0.0
    %193 = vmatpush1.msra.mxu0 0.0
    %194 = vmatprep.subr.mxu0 0.0
    %195 = vmatpush1.msra.mxu0 0.0
    %196 = vmatprep.mubr.f32.mxu0 0.0
    %197 = vmatmul.mubr.f32.gmra.mrb[0].mxu0 %v130
    %v198 = vpop.f32.mrb[0].mxu0
    %v199 = vadd.f32 %v125, %v198
    %v200 = vpop.f32.mrb[0].mxu0
    %201 = vdwg.mxu0
    %v202 = vld [vmem:[%s3] sm:$0x1]
    %v204 = vlaneseq
    %v205 = vshrl.u32 %v204, 7
    %v206 = vsub.s32 0, %v205
    %v207 = vrot.slane %v202, %v206
    %v209 = vadd.f32 %v199, %v207
    %v210 = vtanh.pop %v209
    %v211 = vld [vmem:[%s4] sm:$0xff]
    %v212 = vld [vmem:[%s4 + $0x8] sm:$0xff]
    %v213 = vld [vmem:[%s4 + $0x10] sm:$0xff]
    %v214 = vld [vmem:[%s4 + $0x18] sm:$0xff]
    %v215 = vld [vmem:[%s4 + $0x20] sm:$0xff]
    %v216 = vld [vmem:[%s4 + $0x28] sm:$0xff]
    %v217 = vld [vmem:[%s5] sm:$0x1]
    %v219 = vlaneseq
    %v220 = vshrl.u32 %v219, 7
    %v221 = vsub.s32 0, %v220
    %v222 = vrot.slane %v217, %v221
    %vm224 = vcmask 392192
    %v226 = vsel %vm224, %v210, 0
    %228 = vmatprep.subr.mxu0 0.0
    %229 = vmatpush1.msra.mxu0 %v211
    %230 = vmatprep.subr.mxu0 0.0
    %231 = vmatpush1.msra.mxu0 %v212
    %232 = vmatprep.subr.mxu0 0.0
    %233 = vmatpush1.msra.mxu0 %v213
    %234 = vmatprep.subr.mxu0 0.0
    %235 = vmatpush1.msra.mxu0 %v214
    %236 = vmatprep.subr.mxu0 0.0
    %237 = vmatpush1.msra.mxu0 %v215
    %238 = vmatprep.subr.mxu0 0.0
    %239 = vmatpush1.msra.mxu0 %v216
    %240 = vmatprep.subr.mxu0 0.0
    %241 = vmatpush1.msra.mxu0 0.0
    %242 = vmatprep.subr.mxu0 0.0
    %243 = vmatpush1.msra.mxu0 0.0
    %244 = vmatprep.subr.mxu0 0.0
    %245 = vmatpush1.msra.mxu0 0.0
    %246 = vmatprep.subr.mxu0 0.0
    %247 = vmatpush1.msra.mxu0 0.0
    %248 = vmatprep.subr.mxu0 0.0
    %249 = vmatpush1.msra.mxu0 0.0
    %250 = vmatprep.subr.mxu0 0.0
    %251 = vmatpush1.msra.mxu0 0.0
    %252 = vmatprep.subr.mxu0 0.0
    %253 = vmatpush1.msra.mxu0 0.0
    %254 = vmatprep.subr.mxu0 0.0
    %255 = vmatpush1.msra.mxu0 0.0
    %256 = vmatprep.subr.mxu0 0.0
    %257 = vmatpush1.msra.mxu0 0.0
    %258 = vmatprep.subr.mxu0 0.0
    %259 = vmatpush1.msra.mxu0 0.0
    %260 = vmatprep.subr.mxu0 0.0
    %261 = vmatpush1.msra.mxu0 0.0
    %262 = vmatprep.subr.mxu0 0.0
    %263 = vmatpush1.msra.mxu0 0.0
    %264 = vmatprep.subr.mxu0 0.0
    %265 = vmatpush1.msra.mxu0 0.0
    %266 = vmatprep.subr.mxu0 0.0
    %267 = vmatpush1.msra.mxu0 0.0
    %268 = vmatprep.subr.mxu0 0.0
    %269 = vmatpush1.msra.mxu0 0.0
    %270 = vmatprep.subr.mxu0 0.0
    %271 = vmatpush1.msra.mxu0 0.0
    %272 = vmatprep.subr.mxu0 0.0
    %273 = vmatpush1.msra.mxu0 0.0
    %274 = vmatprep.subr.mxu0 0.0
    %275 = vmatpush1.msra.mxu0 0.0
    %276 = vmatprep.subr.mxu0 0.0
    %277 = vmatpush1.msra.mxu0 0.0
    %278 = vmatprep.subr.mxu0 0.0
    %279 = vmatpush1.msra.mxu0 0.0
    %280 = vmatprep.subr.mxu0 0.0
    %281 = vmatpush1.msra.mxu0 0.0
    %282 = vmatprep.subr.mxu0 0.0
    %283 = vmatpush1.msra.mxu0 0.0
    %284 = vmatprep.subr.mxu0 0.0
    %285 = vmatpush1.msra.mxu0 0.0
    %286 = vmatprep.subr.mxu0 0.0
    %287 = vmatpush1.msra.mxu0 0.0
    %288 = vmatprep.subr.mxu0 0.0
    %289 = vmatpush1.msra.mxu0 0.0
    %290 = vmatprep.subr.mxu0 0.0
    %291 = vmatpush1.msra.mxu0 0.0
    %292 = vmatprep.mubr.f32.mxu0 0.0
    %293 = vmatmul.mubr.f32.gmra.mrb[0].mxu0 %v226
    %v294 = vpop.f32.mrb[0].mxu0
    %v295 = vadd.f32 %v222, %v294
    %v296 = vpop.f32.mrb[0].mxu0
    %297 = vdwg.mxu0
    %vm298 = vcmask 17408
    %299 = vst.msk [vmem:[#allocation2] sm:$0x3] %vm298, %v295
    // Predicated region
    $region26: #{bert_with_word_topics_forward.21} parent=1 // pred_check
      _
    $region27: #{bert_with_word_topics_forward.21} parent=1 // pred_check_branch
      %301 = sbr.rel (0) target = $region29
    $region28: #{bert_with_word_topics_forward.21} parent=1 // pred_region
      %s303 = ssub.s32 32, 32
      %304 = vsyncadd [#allocation3], %s303
      %s306 = sshll.u32 [#allocation2], 4
      %s307 = int_to_ptr.vmem [resolvable:$true] %s306
      %309 = dma.vmem_to_hbm [thread:$0]  %s307, 32, %s6, [#allocation3]
    $region29: #{bert_with_word_topics_forward.21} parent=1 // pred_fallthru
      _
    // Predicated region
    $region30: #{bert_with_word_topics_forward.21} parent=1 // pred_check
      _
    $region31: #{bert_with_word_topics_forward.21} parent=1 // pred_check_branch
      %311 = sbr.rel (0) target = $region33
    $region32: #{bert_with_word_topics_forward.21} parent=1 // pred_region
      %312 = dma.done [#allocation3], 32
    $region33: #{bert_with_word_topics_forward.21} parent=1 // pred_fallthru
      _
    %313 = vsyncpa [#allocation3], 1

</llo_original>
